<compile_context>
chip_gen: v6e
topology: v6e:2x2x1
jax: 0.10.0
libtpu: 0.0.40
codegen_flags: <defaults>
</compile_context>

<pallas_src>
import functools

import jax
import jax.numpy as jnp
from jax.experimental import pallas as pl
from jax.experimental.pallas import tpu as pltpu

_LANE = 128
_SUBLANE = 8


def _round_up(x, m):
    return ((x + m - 1) // m) * m


def _cdiv(a, b):
    return (a + b - 1) // b


def _vmem_capacity_bytes():
    """Physical VMEM of the current TPU generation (fallback: 64 MiB)."""
    try:
        return int(pltpu.get_tpu_info().vmem_capacity_bytes)
    except Exception:
        return 64 << 20   # conservative (v7x-sized) fallback


def _pick_tiling(batch, bytes_per_row, act_vmem_budget):
    """Batch tiling policy.

    - tile rows capped by the VMEM left after resident weights,
    - >= 2 grid steps (v7x 2-TC sharding + DMA/compute overlap),
    - near-equal sublane-multiple tiles so pad waste is ~grid_b*8 rows.
    """
    cap = 512
    if bytes_per_row > 0:
        rows = (act_vmem_budget // bytes_per_row) // _SUBLANE * _SUBLANE
        cap = min(cap, max(rows, _SUBLANE))
    cap = max(_SUBLANE, cap)
    n_tiles = max(2, _cdiv(batch, cap))
    tile_b = min(cap, _round_up(_cdiv(batch, n_tiles), _SUBLANE))
    grid_b = max(2, _cdiv(batch, tile_b))
    return tile_b, grid_b


def _fused_mlp_kernel(*refs):
    """refs = (x_ref, W0, b0, W1, b1, ..., out_ref).

    Chains relu(h @ W_i + b_i) for every layer entirely in VMEM/vregs.
    Matmul operands stay in the compute dtype (f32 or bf16); accumulation,
    bias add and ReLU are f32; h is re-narrowed once per layer.
    """
    x_ref = refs[0]
    out_ref = refs[-1]
    param_refs = refs[1:-1]
    num_layers = len(param_refs) // 2

    h = x_ref[...]                       # already in the compute dtype
    for i in range(num_layers):
        w = param_refs[2 * i][...]
        b = param_refs[2 * i + 1][...]   # (1, fo) float32
        y = jnp.dot(h, w, preferred_element_type=jnp.float32) + b
        y = jnp.maximum(y, 0.0)
        # dropout (p=0.8): identity in eval mode
        h = y if i == num_layers - 1 else y.astype(w.dtype)
    out_ref[...] = h.astype(out_ref.dtype)


def fcc_autoencoder_fused(x, params, *, compute_dtype=jnp.float32,
                          single_buffer_weights=True, pad_features=True):
    """Fused forward: relu-chained Linear layers in a single pallas_call.

    x: (B, D) f32; params: sequence of (W, b) with W in (F_in, F_out) layout.
    """
    B, D_in = x.shape
    num_layers = len(params)
    assert num_layers >= 1
    assert params[0][0].shape[0] == D_in
    F_out = params[-1][0].shape[1]

    def pad_feat(n):
        return _round_up(n, _LANE) if pad_features else n

    D_in_p = pad_feat(D_in)
    F_out_p = pad_feat(F_out)
    cd_bytes = jnp.dtype(compute_dtype).itemsize
    out_bytes = jnp.dtype(x.dtype).itemsize

    # Zero-pad features (lanes): padded weight rows/cols and padded biases are
    # zero and ReLU(0)=0, so results are exact.  Weights go in the compute
    # dtype; biases stay f32 for the f32 bias add.
    padded_params = []
    for (W, b) in params:
        fi, fo = W.shape
        fi_p, fo_p = pad_feat(fi), pad_feat(fo)
        Wp = jnp.pad(W, ((0, fi_p - fi), (0, fo_p - fo))).astype(compute_dtype)
        bp = jnp.pad(b, (0, fo_p - fo)).reshape(1, fo_p).astype(jnp.float32)
        padded_params.append((Wp, bp))

    max_feat = max([D_in_p, F_out_p] + [Wp.shape[1] for Wp, _ in padded_params])
    weight_buf = 1 if single_buffer_weights else 2
    weight_bytes = weight_buf * sum(Wp.size * cd_bytes + bp.size * 4
                                    for (Wp, bp) in padded_params)

    # Generation-aware VMEM ceiling (~85% of physical); pick tile_b from the
    # VMEM left after resident weights + fixed headroom for compiler scratch.
    vmem_ceiling = max(32 << 20, int(0.85 * _vmem_capacity_bytes()))
    headroom = 4 << 20
    act_budget = max(0, vmem_ceiling - weight_bytes - headroom)
    bytes_per_row = (2 * D_in_p * cd_bytes          # x tile, double-buffered
                     + 2 * F_out_p * out_bytes      # out tile, double-buffered
                     + 3 * max_feat * 4)            # live f32 intermediates
    tile_b, grid_b = _pick_tiling(B, bytes_per_row, act_budget)
    B_pad = grid_b * tile_b

    # Activations enter the kernel already in the compute dtype (halves the
    # per-tile DMA on the bf16 path).  Padded rows/cols are zero.
    x_p = jnp.pad(x, ((0, B_pad - B), (0, D_in_p - D_in))).astype(compute_dtype)

    # Weights/biases use a constant index_map (DMA'd once, resident); mark
    # them single-buffered so the pipeline does not allocate a useless second
    # copy.  Activations keep the default double-buffering.
    if single_buffer_weights:
        param_pipeline = dict(pipeline_mode=pl.Buffered(1))
    else:
        param_pipeline = {}

    in_specs = [pl.BlockSpec((tile_b, D_in_p), lambda i: (i, 0))]
    flat_args = [x_p]
    for (Wp, bp) in padded_params:
        fi_p, fo_p = Wp.shape
        in_specs.append(pl.BlockSpec((fi_p, fo_p), lambda i: (0, 0),
                                     **param_pipeline))
        in_specs.append(pl.BlockSpec((1, fo_p), lambda i: (0, 0),
                                     **param_pipeline))
        flat_args.extend((Wp, bp))
    out_spec = pl.BlockSpec((tile_b, F_out_p), lambda i: (i, 0))

    # Honest VMEM estimate: weights counted per their buffer count, in/out
    # tiles double-buffered, a few live intermediates, 1.25x headroom,
    # clamped to the generation ceiling.
    io_bytes = 2 * tile_b * (D_in_p * cd_bytes + F_out_p * out_bytes)
    act_bytes = 3 * tile_b * max_feat * 4
    vmem_est = weight_bytes + io_bytes + act_bytes
    vmem_limit = int(min(vmem_ceiling, max(32 << 20, int(1.25 * vmem_est))))

    flops = sum(2 * B_pad * Wp.shape[0] * Wp.shape[1]
                for (Wp, _) in padded_params)
    bytes_accessed = (x_p.size * cd_bytes
                      + sum(Wp.size * cd_bytes + bp.size * 4
                            for (Wp, bp) in padded_params)
                      + B_pad * F_out_p * out_bytes)

    out = pl.pallas_call(
        _fused_mlp_kernel,
        out_shape=jax.ShapeDtypeStruct((B_pad, F_out_p), x.dtype),
        grid_spec=pltpu.PrefetchScalarGridSpec(
            num_scalar_prefetch=0,
            grid=(grid_b,),
            in_specs=in_specs,
            out_specs=out_spec,
        ),
        compiler_params=pltpu.CompilerParams(
            dimension_semantics=("parallel",),
            vmem_limit_bytes=vmem_limit,
        ),
        cost_estimate=pl.CostEstimate(
            flops=flops, transcendentals=0, bytes_accessed=bytes_accessed),
    )(*flat_args)

    return out[:B, :F_out]


# jit'd entry points: exact-f32 path and bf16-operand / f32-accumulate path.
fcc_autoencoder_forward = jax.jit(
    functools.partial(fcc_autoencoder_fused, compute_dtype=jnp.float32))
fcc_autoencoder_forward_bf16 = jax.jit(
    functools.partial(fcc_autoencoder_fused, compute_dtype=jnp.bfloat16))


def init_fcc_autoencoder_params(key, D, Z, num_layer, dtype=jnp.float32):
    """Deterministic init mirroring the PyTorch module's layer shapes.

    Returns list of (W, b) with W already in (F_in, F_out) layout.
    Encoder layer n: (D -> D) for n < num_layer-1, last is (D -> Z).
    Decoder layer n: first is (Z -> D), rest are (D -> D).
    """
    dims = []
    w1 = D
    for n in range(num_layer):
        w2 = Z if n == num_layer - 1 else w1
        dims.append((w1, w2))
        w1 = w2
    for n in range(num_layer):
        fi, fo = (Z, D) if n == 0 else (D, D)
        dims.append((fi, fo))

    params = []
    for (fi, fo) in dims:
        key, kw, kb = jax.random.split(key, 3)
        # kaiming_normal_ (fan_in, gain=sqrt(2)) on the torch (out,in) weight
        std = (2.0 / fi) ** 0.5
        W = jax.random.normal(kw, (fi, fo), dtype=dtype) * std   # stored (in, out)
        b = jax.random.normal(kb, (fo,), dtype=dtype)            # nn.init.normal_
        params.append((W, b))
    return params


def _ref_forward(x, params):
    h = x
    for (W, b) in params:
        h = jnp.maximum(h @ W + b, 0.0)
    return h


def _run_with_fallback(x, params, compute_dtype, jitted):
    """Run the jitted single-buffer-weight path; if pl.Buffered(1) is not
    supported by this JAX version, fall back to default double-buffering."""
    try:
        return jax.block_until_ready(jitted(x, params))
    except Exception:
        fallback = jax.jit(functools.partial(
            fcc_autoencoder_fused, compute_dtype=compute_dtype,
            single_buffer_weights=False))
        return jax.block_until_ready(fallback(x, params))


if __name__ == "__main__":
    # Small shapes consistent with forward(): X is (batch, D)
    B, D, Z, NUM_LAYER = 8, 64, 16, 2

    key = jax.random.PRNGKey(0)
    key, kx = jax.random.split(key)
    x = jax.random.normal(kx, (B, D), dtype=jnp.float32)

    params = init_fcc_autoencoder_params(key, D, Z, NUM_LAYER)
    params = tuple((jnp.asarray(W), jnp.asarray(b)) for (W, b) in params)

    ref = _ref_forward(x, params)

    # Exact f32 path.
    out = _run_with_fallback(x, params, jnp.float32, fcc_autoencoder_forward)
    assert out.shape == (B, D), out.shape
    assert jnp.allclose(out, ref, atol=1e-5, rtol=1e-5), "f32 mismatch vs reference"

    # bf16-operand / f32-accumulate path (MXU-native on v5e/v6e/v7x).
    out_bf16 = _run_with_fallback(x, params, jnp.bfloat16,
                                  fcc_autoencoder_forward_bf16)
    assert out_bf16.shape == (B, D), out_bf16.shape
    assert jnp.allclose(out_bf16, ref, atol=2e-1, rtol=2e-1), "bf16 mismatch vs reference"

    print("KERNEL_OK")
</pallas_src>

<mosaic_0001>
module attributes {stable_mosaic.version = 11 : i64} {
  func.func @_fused_mlp_kernel(%arg0: i32, %arg1: memref<8x128xf32, #tpu.memory_space<vmem>>, %arg2: memref<128x128xf32, #tpu.memory_space<vmem>>, %arg3: memref<1x128xf32, #tpu.memory_space<vmem>>, %arg4: memref<128x128xf32, #tpu.memory_space<vmem>>, %arg5: memref<1x128xf32, #tpu.memory_space<vmem>>, %arg6: memref<128x128xf32, #tpu.memory_space<vmem>>, %arg7: memref<1x128xf32, #tpu.memory_space<vmem>>, %arg8: memref<128x128xf32, #tpu.memory_space<vmem>>, %arg9: memref<1x128xf32, #tpu.memory_space<vmem>>, %arg10: memref<8x128xf32, #tpu.memory_space<vmem>>) attributes {dimension_semantics = [#tpu.dimension_semantics<parallel>], iteration_bounds = array<i64: 2>, scalar_prefetch = 0 : i64, scratch_operands = 0 : i64, tpu.core_type = #tpu.core_type<tc>, window_params = [{transform_indices = @transform_0, window_bounds = array<i64: 8, 128>}, {pipeline_mode = #tpu.pipeline_mode<synchronous>, transform_indices = @transform_1, window_bounds = array<i64: 128, 128>}, {pipeline_mode = #tpu.pipeline_mode<synchronous>, transform_indices = @transform_2, window_bounds = array<i64: 1, 128>}, {pipeline_mode = #tpu.pipeline_mode<synchronous>, transform_indices = @transform_3, window_bounds = array<i64: 128, 128>}, {pipeline_mode = #tpu.pipeline_mode<synchronous>, transform_indices = @transform_4, window_bounds = array<i64: 1, 128>}, {pipeline_mode = #tpu.pipeline_mode<synchronous>, transform_indices = @transform_5, window_bounds = array<i64: 128, 128>}, {pipeline_mode = #tpu.pipeline_mode<synchronous>, transform_indices = @transform_6, window_bounds = array<i64: 1, 128>}, {pipeline_mode = #tpu.pipeline_mode<synchronous>, transform_indices = @transform_7, window_bounds = array<i64: 128, 128>}, {pipeline_mode = #tpu.pipeline_mode<synchronous>, transform_indices = @transform_8, window_bounds = array<i64: 1, 128>}, {transform_indices = @transform_9, window_bounds = array<i64: 8, 128>}]} {
    %c0 = arith.constant 0 : index
    %c0_0 = arith.constant 0 : index
    %0 = vector.load %arg1[%c0, %c0_0] : memref<8x128xf32, #tpu.memory_space<vmem>>, vector<8x128xf32>
    %c0_1 = arith.constant 0 : index
    %c0_2 = arith.constant 0 : index
    %1 = vector.load %arg2[%c0_1, %c0_2] : memref<128x128xf32, #tpu.memory_space<vmem>>, vector<128x128xf32>
    %c0_3 = arith.constant 0 : index
    %c0_4 = arith.constant 0 : index
    %2 = vector.load %arg3[%c0_3, %c0_4] : memref<1x128xf32, #tpu.memory_space<vmem>>, vector<1x128xf32>
    %cst = arith.constant dense<0.000000e+00> : vector<8x128xf32>
    %3 = tpu.matmul %0, %1, %cst {dimension_numbers = #tpu.dot_dimension_numbers<[1], [0], [0], [1], [0, 0, 1, 1], [], []>} : vector<8x128xf32>, vector<128x128xf32>, vector<8x128xf32> -> vector<8x128xf32>
    %4 = vector.broadcast %2 : vector<1x128xf32> to vector<8x128xf32>
    %5 = arith.addf %3, %4 : vector<8x128xf32>
    %cst_5 = arith.constant 0.000000e+00 : f32
    %6 = vector.broadcast %cst_5 : f32 to vector<8x128xf32>
    %7 = arith.maximumf %5, %6 : vector<8x128xf32>
    %c0_6 = arith.constant 0 : index
    %c0_7 = arith.constant 0 : index
    %8 = vector.load %arg4[%c0_6, %c0_7] : memref<128x128xf32, #tpu.memory_space<vmem>>, vector<128x128xf32>
    %c0_8 = arith.constant 0 : index
    %c0_9 = arith.constant 0 : index
    %9 = vector.load %arg5[%c0_8, %c0_9] : memref<1x128xf32, #tpu.memory_space<vmem>>, vector<1x128xf32>
    %cst_10 = arith.constant dense<0.000000e+00> : vector<8x128xf32>
    %10 = tpu.matmul %7, %8, %cst_10 {dimension_numbers = #tpu.dot_dimension_numbers<[1], [0], [0], [1], [0, 0, 1, 1], [], []>} : vector<8x128xf32>, vector<128x128xf32>, vector<8x128xf32> -> vector<8x128xf32>
    %11 = vector.broadcast %9 : vector<1x128xf32> to vector<8x128xf32>
    %12 = arith.addf %10, %11 : vector<8x128xf32>
    %cst_11 = arith.constant 0.000000e+00 : f32
    %13 = vector.broadcast %cst_11 : f32 to vector<8x128xf32>
    %14 = arith.maximumf %12, %13 : vector<8x128xf32>
    %c0_12 = arith.constant 0 : index
    %c0_13 = arith.constant 0 : index
    %15 = vector.load %arg6[%c0_12, %c0_13] : memref<128x128xf32, #tpu.memory_space<vmem>>, vector<128x128xf32>
    %c0_14 = arith.constant 0 : index
    %c0_15 = arith.constant 0 : index
    %16 = vector.load %arg7[%c0_14, %c0_15] : memref<1x128xf32, #tpu.memory_space<vmem>>, vector<1x128xf32>
    %cst_16 = arith.constant dense<0.000000e+00> : vector<8x128xf32>
    %17 = tpu.matmul %14, %15, %cst_16 {dimension_numbers = #tpu.dot_dimension_numbers<[1], [0], [0], [1], [0, 0, 1, 1], [], []>} : vector<8x128xf32>, vector<128x128xf32>, vector<8x128xf32> -> vector<8x128xf32>
    %18 = vector.broadcast %16 : vector<1x128xf32> to vector<8x128xf32>
    %19 = arith.addf %17, %18 : vector<8x128xf32>
    %cst_17 = arith.constant 0.000000e+00 : f32
    %20 = vector.broadcast %cst_17 : f32 to vector<8x128xf32>
    %21 = arith.maximumf %19, %20 : vector<8x128xf32>
    %c0_18 = arith.constant 0 : index
    %c0_19 = arith.constant 0 : index
    %22 = vector.load %arg8[%c0_18, %c0_19] : memref<128x128xf32, #tpu.memory_space<vmem>>, vector<128x128xf32>
    %c0_20 = arith.constant 0 : index
    %c0_21 = arith.constant 0 : index
    %23 = vector.load %arg9[%c0_20, %c0_21] : memref<1x128xf32, #tpu.memory_space<vmem>>, vector<1x128xf32>
    %cst_22 = arith.constant dense<0.000000e+00> : vector<8x128xf32>
    %24 = tpu.matmul %21, %22, %cst_22 {dimension_numbers = #tpu.dot_dimension_numbers<[1], [0], [0], [1], [0, 0, 1, 1], [], []>} : vector<8x128xf32>, vector<128x128xf32>, vector<8x128xf32> -> vector<8x128xf32>
    %25 = vector.broadcast %23 : vector<1x128xf32> to vector<8x128xf32>
    %26 = arith.addf %24, %25 : vector<8x128xf32>
    %cst_23 = arith.constant 0.000000e+00 : f32
    %27 = vector.broadcast %cst_23 : f32 to vector<8x128xf32>
    %28 = arith.maximumf %26, %27 : vector<8x128xf32>
    %c0_24 = arith.constant 0 : index
    %c0_25 = arith.constant 0 : index
    %29 = vector.load %arg10[%c0_24, %c0_25] : memref<8x128xf32, #tpu.memory_space<vmem>>, vector<8x128xf32>
    tpu.vector_store %arg10[%c0_24, %c0_25], %28 {strides = array<i32>} : memref<8x128xf32, #tpu.memory_space<vmem>>, vector<8x128xf32>,
    return
  }
  func.func @transform_0(%arg0: i32) -> (i32, i32) {
    %c0_i32 = arith.constant 0 : i32
    %c0_i32_0 = arith.constant 0 : i32
    return %arg0, %c0_i32 : i32, i32
  }
  func.func @transform_1(%arg0: i32) -> (i32, i32) {
    %c0_i32 = arith.constant 0 : i32
    %c0_i32_0 = arith.constant 0 : i32
    %c0_i32_1 = arith.constant 0 : i32
    return %c0_i32, %c0_i32_0 : i32, i32
  }
  func.func @transform_2(%arg0: i32) -> (i32, i32) {
    %c0_i32 = arith.constant 0 : i32
    %c0_i32_0 = arith.constant 0 : i32
    %c0_i32_1 = arith.constant 0 : i32
    return %c0_i32, %c0_i32_0 : i32, i32
  }
  func.func @transform_3(%arg0: i32) -> (i32, i32) {
    %c0_i32 = arith.constant 0 : i32
    %c0_i32_0 = arith.constant 0 : i32
    %c0_i32_1 = arith.constant 0 : i32
    return %c0_i32, %c0_i32_0 : i32, i32
  }
  func.func @transform_4(%arg0: i32) -> (i32, i32) {
    %c0_i32 = arith.constant 0 : i32
    %c0_i32_0 = arith.constant 0 : i32
    %c0_i32_1 = arith.constant 0 : i32
    return %c0_i32, %c0_i32_0 : i32, i32
  }
  func.func @transform_5(%arg0: i32) -> (i32, i32) {
    %c0_i32 = arith.constant 0 : i32
    %c0_i32_0 = arith.constant 0 : i32
    %c0_i32_1 = arith.constant 0 : i32
    return %c0_i32, %c0_i32_0 : i32, i32
  }
  func.func @transform_6(%arg0: i32) -> (i32, i32) {
    %c0_i32 = arith.constant 0 : i32
    %c0_i32_0 = arith.constant 0 : i32
    %c0_i32_1 = arith.constant 0 : i32
    return %c0_i32, %c0_i32_0 : i32, i32
  }
  func.func @transform_7(%arg0: i32) -> (i32, i32) {
    %c0_i32 = arith.constant 0 : i32
    %c0_i32_0 = arith.constant 0 : i32
    %c0_i32_1 = arith.constant 0 : i32
    return %c0_i32, %c0_i32_0 : i32, i32
  }
  func.func @transform_8(%arg0: i32) -> (i32, i32) {
    %c0_i32 = arith.constant 0 : i32
    %c0_i32_0 = arith.constant 0 : i32
    %c0_i32_1 = arith.constant 0 : i32
    return %c0_i32, %c0_i32_0 : i32, i32
  }
  func.func @transform_9(%arg0: i32) -> (i32, i32) {
    %c0_i32 = arith.constant 0 : i32
    %c0_i32_0 = arith.constant 0 : i32
    return %arg0, %c0_i32 : i32, i32
  }
}

module attributes {stable_mosaic.version = 11 : i64} {
  func.func @_fused_mlp_kernel(%arg0: i32, %arg1: memref<8x128xf32, #tpu.memory_space<vmem>>, %arg2: memref<128x128xf32, #tpu.memory_space<vmem>>, %arg3: memref<1x128xf32, #tpu.memory_space<vmem>>, %arg4: memref<128x128xf32, #tpu.memory_space<vmem>>, %arg5: memref<1x128xf32, #tpu.memory_space<vmem>>, %arg6: memref<128x128xf32, #tpu.memory_space<vmem>>, %arg7: memref<1x128xf32, #tpu.memory_space<vmem>>, %arg8: memref<128x128xf32, #tpu.memory_space<vmem>>, %arg9: memref<1x128xf32, #tpu.memory_space<vmem>>, %arg10: memref<8x128xf32, #tpu.memory_space<vmem>>) attributes {dimension_semantics = [#tpu.dimension_semantics<parallel>], iteration_bounds = array<i64: 2>, scalar_prefetch = 0 : i64, scratch_operands = 0 : i64, tpu.core_type = #tpu.core_type<tc>, window_params = [{transform_indices = @transform_0, window_bounds = array<i64: 8, 128>}, {pipeline_mode = #tpu.pipeline_mode<synchronous>, transform_indices = @transform_1, window_bounds = array<i64: 128, 128>}, {pipeline_mode = #tpu.pipeline_mode<synchronous>, transform_indices = @transform_2, window_bounds = array<i64: 1, 128>}, {pipeline_mode = #tpu.pipeline_mode<synchronous>, transform_indices = @transform_3, window_bounds = array<i64: 128, 128>}, {pipeline_mode = #tpu.pipeline_mode<synchronous>, transform_indices = @transform_4, window_bounds = array<i64: 1, 128>}, {pipeline_mode = #tpu.pipeline_mode<synchronous>, transform_indices = @transform_5, window_bounds = array<i64: 128, 128>}, {pipeline_mode = #tpu.pipeline_mode<synchronous>, transform_indices = @transform_6, window_bounds = array<i64: 1, 128>}, {pipeline_mode = #tpu.pipeline_mode<synchronous>, transform_indices = @transform_7, window_bounds = array<i64: 128, 128>}, {pipeline_mode = #tpu.pipeline_mode<synchronous>, transform_indices = @transform_8, window_bounds = array<i64: 1, 128>}, {transform_indices = @transform_9, window_bounds = array<i64: 8, 128>}]} {
    %c0 = arith.constant 0 : index
    %c0_0 = arith.constant 0 : index
    %0 = vector.load %arg1[%c0, %c0_0] : memref<8x128xf32, #tpu.memory_space<vmem>>, vector<8x128xf32>
    %c0_1 = arith.constant 0 : index
    %c0_2 = arith.constant 0 : index
    %1 = vector.load %arg2[%c0_1, %c0_2] : memref<128x128xf32, #tpu.memory_space<vmem>>, vector<128x128xf32>
    %c0_3 = arith.constant 0 : index
    %c0_4 = arith.constant 0 : index
    %2 = vector.load %arg3[%c0_3, %c0_4] : memref<1x128xf32, #tpu.memory_space<vmem>>, vector<1x128xf32>
    %cst = arith.constant dense<0.000000e+00> : vector<8x128xf32>
    %3 = tpu.matmul %0, %1, %cst {dimension_numbers = #tpu.dot_dimension_numbers<[1], [0], [0], [1], [0, 0, 1, 1], [], []>} : vector<8x128xf32>, vector<128x128xf32>, vector<8x128xf32> -> vector<8x128xf32>
    %4 = vector.broadcast %2 : vector<1x128xf32> to vector<8x128xf32>
    %5 = arith.addf %3, %4 : vector<8x128xf32>
    %cst_5 = arith.constant 0.000000e+00 : f32
    %6 = vector.broadcast %cst_5 : f32 to vector<8x128xf32>
    %7 = arith.maximumf %5, %6 : vector<8x128xf32>
    %c0_6 = arith.constant 0 : index
    %c0_7 = arith.constant 0 : index
    %8 = vector.load %arg4[%c0_6, %c0_7] : memref<128x128xf32, #tpu.memory_space<vmem>>, vector<128x128xf32>
    %c0_8 = arith.constant 0 : index
    %c0_9 = arith.constant 0 : index
    %9 = vector.load %arg5[%c0_8, %c0_9] : memref<1x128xf32, #tpu.memory_space<vmem>>, vector<1x128xf32>
    %cst_10 = arith.constant dense<0.000000e+00> : vector<8x128xf32>
    %10 = tpu.matmul %7, %8, %cst_10 {dimension_numbers = #tpu.dot_dimension_numbers<[1], [0], [0], [1], [0, 0, 1, 1], [], []>} : vector<8x128xf32>, vector<128x128xf32>, vector<8x128xf32> -> vector<8x128xf32>
    %11 = vector.broadcast %9 : vector<1x128xf32> to vector<8x128xf32>
    %12 = arith.addf %10, %11 : vector<8x128xf32>
    %cst_11 = arith.constant 0.000000e+00 : f32
    %13 = vector.broadcast %cst_11 : f32 to vector<8x128xf32>
    %14 = arith.maximumf %12, %13 : vector<8x128xf32>
    %c0_12 = arith.constant 0 : index
    %c0_13 = arith.constant 0 : index
    %15 = vector.load %arg6[%c0_12, %c0_13] : memref<128x128xf32, #tpu.memory_space<vmem>>, vector<128x128xf32>
    %c0_14 = arith.constant 0 : index
    %c0_15 = arith.constant 0 : index
    %16 = vector.load %arg7[%c0_14, %c0_15] : memref<1x128xf32, #tpu.memory_space<vmem>>, vector<1x128xf32>
    %cst_16 = arith.constant dense<0.000000e+00> : vector<8x128xf32>
    %17 = tpu.matmul %14, %15, %cst_16 {dimension_numbers = #tpu.dot_dimension_numbers<[1], [0], [0], [1], [0, 0, 1, 1], [], []>} : vector<8x128xf32>, vector<128x128xf32>, vector<8x128xf32> -> vector<8x128xf32>
    %18 = vector.broadcast %16 : vector<1x128xf32> to vector<8x128xf32>
    %19 = arith.addf %17, %18 : vector<8x128xf32>
    %cst_17 = arith.constant 0.000000e+00 : f32
    %20 = vector.broadcast %cst_17 : f32 to vector<8x128xf32>
    %21 = arith.maximumf %19, %20 : vector<8x128xf32>
    %c0_18 = arith.constant 0 : index
    %c0_19 = arith.constant 0 : index
    %22 = vector.load %arg8[%c0_18, %c0_19] : memref<128x128xf32, #tpu.memory_space<vmem>>, vector<128x128xf32>
    %c0_20 = arith.constant 0 : index
    %c0_21 = arith.constant 0 : index
    %23 = vector.load %arg9[%c0_20, %c0_21] : memref<1x128xf32, #tpu.memory_space<vmem>>, vector<1x128xf32>
    %cst_22 = arith.constant dense<0.000000e+00> : vector<8x128xf32>
    %24 = tpu.matmul %21, %22, %cst_22 {dimension_numbers = #tpu.dot_dimension_numbers<[1], [0], [0], [1], [0, 0, 1, 1], [], []>} : vector<8x128xf32>, vector<128x128xf32>, vector<8x128xf32> -> vector<8x128xf32>
    %25 = vector.broadcast %23 : vector<1x128xf32> to vector<8x128xf32>
    %26 = arith.addf %24, %25 : vector<8x128xf32>
    %cst_23 = arith.constant 0.000000e+00 : f32
    %27 = vector.broadcast %cst_23 : f32 to vector<8x128xf32>
    %28 = arith.maximumf %26, %27 : vector<8x128xf32>
    %c0_24 = arith.constant 0 : index
    %c0_25 = arith.constant 0 : index
    %29 = vector.load %arg10[%c0_24, %c0_25] : memref<8x128xf32, #tpu.memory_space<vmem>>, vector<8x128xf32>
    tpu.vector_store %arg10[%c0_24, %c0_25], %28 {strides = array<i32>} : memref<8x128xf32, #tpu.memory_space<vmem>>, vector<8x128xf32>,
    return
  }
  func.func @transform_0(%arg0: i32) -> (i32, i32) {
    %c0_i32 = arith.constant 0 : i32
    %c0_i32_0 = arith.constant 0 : i32
    return %arg0, %c0_i32 : i32, i32
  }
  func.func @transform_1(%arg0: i32) -> (i32, i32) {
    %c0_i32 = arith.constant 0 : i32
    %c0_i32_0 = arith.constant 0 : i32
    %c0_i32_1 = arith.constant 0 : i32
    return %c0_i32, %c0_i32_0 : i32, i32
  }
  func.func @transform_2(%arg0: i32) -> (i32, i32) {
    %c0_i32 = arith.constant 0 : i32
    %c0_i32_0 = arith.constant 0 : i32
    %c0_i32_1 = arith.constant 0 : i32
    return %c0_i32, %c0_i32_0 : i32, i32
  }
  func.func @transform_3(%arg0: i32) -> (i32, i32) {
    %c0_i32 = arith.constant 0 : i32
    %c0_i32_0 = arith.constant 0 : i32
    %c0_i32_1 = arith.constant 0 : i32
    return %c0_i32, %c0_i32_0 : i32, i32
  }
  func.func @transform_4(%arg0: i32) -> (i32, i32) {
    %c0_i32 = arith.constant 0 : i32
    %c0_i32_0 = arith.constant 0 : i32
    %c0_i32_1 = arith.constant 0 : i32
    return %c0_i32, %c0_i32_0 : i32, i32
  }
  func.func @transform_5(%arg0: i32) -> (i32, i32) {
    %c0_i32 = arith.constant 0 : i32
    %c0_i32_0 = arith.constant 0 : i32
    %c0_i32_1 = arith.constant 0 : i32
    return %c0_i32, %c0_i32_0 : i32, i32
  }
  func.func @transform_6(%arg0: i32) -> (i32, i32) {
    %c0_i32 = arith.constant 0 : i32
    %c0_i32_0 = arith.constant 0 : i32
    %c0_i32_1 = arith.constant 0 : i32
    return %c0_i32, %c0_i32_0 : i32, i32
  }
  func.func @transform_7(%arg0: i32) -> (i32, i32) {
    %c0_i32 = arith.constant 0 : i32
    %c0_i32_0 = arith.constant 0 : i32
    %c0_i32_1 = arith.constant 0 : i32
    return %c0_i32, %c0_i32_0 : i32, i32
  }
  func.func @transform_8(%arg0: i32) -> (i32, i32) {
    %c0_i32 = arith.constant 0 : i32
    %c0_i32_0 = arith.constant 0 : i32
    %c0_i32_1 = arith.constant 0 : i32
    return %c0_i32, %c0_i32_0 : i32, i32
  }
  func.func @transform_9(%arg0: i32) -> (i32, i32) {
    %c0_i32 = arith.constant 0 : i32
    %c0_i32_0 = arith.constant 0 : i32
    return %arg0, %c0_i32 : i32, i32
  }
}

</mosaic_0001>

<llo_original>
// kernel: fcc_autoencoder_fused.1
$region0: #{fcc_autoencoder_fused.1}
  #allocation0 [shape = 'u32[]', space=smem, size = 0x4, offset = 0x4, fixed_abs, tag = 'smem constant byte address 0x4 - core index']
  #allocation1 [shape = 'u32[144,128]{1,0:T(1,128)}', space=vmem, size = 0x12000, scoped, tag = 'internal scratch']
  %s0 = inlined_call_operand.vmem [shape: f32[16,128], index: 0, kind: input, shape index: {}]
  %s1 = inlined_call_operand.vmem [shape: f32[128,128], index: 1, kind: input, shape index: {}]
  %s2 = inlined_call_operand.vmem [shape: f32[1,128], index: 2, kind: input, shape index: {}]
  %s3 = inlined_call_operand.vmem [shape: f32[128,128], index: 3, kind: input, shape index: {}]
  %s4 = inlined_call_operand.vmem [shape: f32[1,128], index: 4, kind: input, shape index: {}]
  %s5 = inlined_call_operand.vmem [shape: f32[128,128], index: 5, kind: input, shape index: {}]
  %s6 = inlined_call_operand.vmem [shape: f32[1,128], index: 6, kind: input, shape index: {}]
  %s7 = inlined_call_operand.vmem [shape: f32[128,128], index: 7, kind: input, shape index: {}]
  %s8 = inlined_call_operand.vmem [shape: f32[1,128], index: 8, kind: input, shape index: {}]
  %s9 = inlined_call_operand.vmem [shape: f32[16,128], index: 9, kind: output, shape index: {}]
  %s10 = sld [smem:[#allocation0]]
  $region69: #{fcc_autoencoder_fused.1} parent=0
    _
  %s12 = ssub.s32 1, %s10
  %s13 = scalar_select 0, %s12, %s10
  loop: start=0, step=1, limit=4
  $region2: #{fcc_autoencoder_fused.1} parent=0 // loop_pre_header
    _
  $region3: #{fcc_autoencoder_fused.1} parent=0 // loop_header
    %s15 = sphi 0, %s19
    %p16 = scmp.ge.s32.totalorder %s15, 4
    %s25 = sphi 0, %s27
    %s28 = sphi 0, %s25
    %s29 = sphi 0, %s28
    %s45 = sphi 0, %s29
    %s49 = sphi 0, %s49
    %s51 = sphi 0, %s49
    %s52 = sphi 0, %s51
    %s66 = sphi 0, %s52
    %s70 = sphi 0, %s70
    %s72 = sphi 0, %s70
    %s73 = sphi 0, %s72
    %s87 = sphi 0, %s73
    %s91 = sphi 0, %s91
    %s93 = sphi 0, %s91
    %s94 = sphi 0, %s93
    %s108 = sphi 0, %s94
    %s112 = sphi 0, %s112
    %s114 = sphi 0, %s112
    %s115 = sphi 0, %s114
    %s129 = sphi 0, %s115
    %s133 = sphi 0, %s133
    %s135 = sphi 0, %s133
    %s136 = sphi 0, %s135
    %s150 = sphi 0, %s136
    %s154 = sphi 0, %s154
    %s156 = sphi 0, %s154
    %s157 = sphi 0, %s156
    %s171 = sphi 0, %s157
    %s175 = sphi 0, %s175
    %s177 = sphi 0, %s175
    %s178 = sphi 0, %s177
    %s192 = sphi 0, %s178
    %s196 = sphi 0, %s196
    %s198 = sphi 0, %s196
    %s199 = sphi 0, %s198
    %s213 = sphi 0, %s199
    %s219 = sphi 0, %s221
    %s222 = sphi 0, %s219
    %s223 = sphi 0, %s222
    %s239 = sphi 0, %s223
  $region4: #{fcc_autoencoder_fused.1} parent=0 // loop_header_branch
    %18 = sbr.rel (%p16) target = $region8
  $region5: #{fcc_autoencoder_fused.1} parent=0 // loop_body
    %s20 = ssub.s32 %s15, 1
    %s21 = ssub.s32 %s15, 2
    %s22 = sadd.s32 %s15, 1
    %s23 = ssub.s32 %s15, %s22
    %p24 = scmp.eq.s32.totalorder %s23, 0
    %s26 = sadd.s32 %s25, 1
    %s27 = scalar_select %p24, %s25, %s26
    %p30 = pneg %p24
    %p31 = scmp.eq.s32.totalorder %s15, 1
    %p32 = por %p30, %p31
    %p33 = scmp.ne.s32.totalorder %s25, %s28
    %p34 = scmp.eq.s32.totalorder %s15, 0
    %p35 = por %p33, %p34
    %p36 = scmp.ne.s32.totalorder %s25, %s28
    %p37 = scmp.eq.s32.totalorder %s20, 1
    %p38 = por %p36, %p37
    %p39 = scmp.ne.s32.totalorder %s28, %s29
    %p40 = scmp.eq.s32.totalorder %s20, 0
    %p41 = por %p39, %p40
    %p42 = scmp.ne.s32.totalorder %s28, %s29
    %p43 = scmp.eq.s32.totalorder %s21, 1
    %p44 = por %p42, %p43
    %p46 = scmp.ne.s32.totalorder %s29, %s45
    %p47 = scmp.eq.s32.totalorder %s21, 0
    %p48 = por %p46, %p47
    %s50 = sadd.s32 %s49, 1
    %p53 = scmp.eq.s32.totalorder %s15, 1
    %p54 = scmp.ne.s32.totalorder %s49, %s51
    %p55 = scmp.eq.s32.totalorder %s15, 0
    %p56 = por %p54, %p55
    %p57 = scmp.ne.s32.totalorder %s49, %s51
    %p58 = scmp.eq.s32.totalorder %s20, 1
    %p59 = por %p57, %p58
    %p60 = scmp.ne.s32.totalorder %s51, %s52
    %p61 = scmp.eq.s32.totalorder %s20, 0
    %p62 = por %p60, %p61
    %p63 = scmp.ne.s32.totalorder %s51, %s52
    %p64 = scmp.eq.s32.totalorder %s21, 1
    %p65 = por %p63, %p64
    %p67 = scmp.ne.s32.totalorder %s52, %s66
    %p68 = scmp.eq.s32.totalorder %s21, 0
    %p69 = por %p67, %p68
    %s71 = sadd.s32 %s70, 1
    %p74 = scmp.eq.s32.totalorder %s15, 1
    %p75 = scmp.ne.s32.totalorder %s70, %s72
    %p76 = scmp.eq.s32.totalorder %s15, 0
    %p77 = por %p75, %p76
    %p78 = scmp.ne.s32.totalorder %s70, %s72
    %p79 = scmp.eq.s32.totalorder %s20, 1
    %p80 = por %p78, %p79
    %p81 = scmp.ne.s32.totalorder %s72, %s73
    %p82 = scmp.eq.s32.totalorder %s20, 0
    %p83 = por %p81, %p82
    %p84 = scmp.ne.s32.totalorder %s72, %s73
    %p85 = scmp.eq.s32.totalorder %s21, 1
    %p86 = por %p84, %p85
    %p88 = scmp.ne.s32.totalorder %s73, %s87
    %p89 = scmp.eq.s32.totalorder %s21, 0
    %p90 = por %p88, %p89
    %s92 = sadd.s32 %s91, 1
    %p95 = scmp.eq.s32.totalorder %s15, 1
    %p96 = scmp.ne.s32.totalorder %s91, %s93
    %p97 = scmp.eq.s32.totalorder %s15, 0
    %p98 = por %p96, %p97
    %p99 = scmp.ne.s32.totalorder %s91, %s93
    %p100 = scmp.eq.s32.totalorder %s20, 1
    %p101 = por %p99, %p100
    %p102 = scmp.ne.s32.totalorder %s93, %s94
    %p103 = scmp.eq.s32.totalorder %s20, 0
    %p104 = por %p102, %p103
    %p105 = scmp.ne.s32.totalorder %s93, %s94
    %p106 = scmp.eq.s32.totalorder %s21, 1
    %p107 = por %p105, %p106
    %p109 = scmp.ne.s32.totalorder %s94, %s108
    %p110 = scmp.eq.s32.totalorder %s21, 0
    %p111 = por %p109, %p110
    %s113 = sadd.s32 %s112, 1
    %p116 = scmp.eq.s32.totalorder %s15, 1
    %p117 = scmp.ne.s32.totalorder %s112, %s114
    %p118 = scmp.eq.s32.totalorder %s15, 0
    %p119 = por %p117, %p118
    %p120 = scmp.ne.s32.totalorder %s112, %s114
    %p121 = scmp.eq.s32.totalorder %s20, 1
    %p122 = por %p120, %p121
    %p123 = scmp.ne.s32.totalorder %s114, %s115
    %p124 = scmp.eq.s32.totalorder %s20, 0
    %p125 = por %p123, %p124
    %p126 = scmp.ne.s32.totalorder %s114, %s115
    %p127 = scmp.eq.s32.totalorder %s21, 1
    %p128 = por %p126, %p127
    %p130 = scmp.ne.s32.totalorder %s115, %s129
    %p131 = scmp.eq.s32.totalorder %s21, 0
    %p132 = por %p130, %p131
    %s134 = sadd.s32 %s133, 1
    %p137 = scmp.eq.s32.totalorder %s15, 1
    %p138 = scmp.ne.s32.totalorder %s133, %s135
    %p139 = scmp.eq.s32.totalorder %s15, 0
    %p140 = por %p138, %p139
    %p141 = scmp.ne.s32.totalorder %s133, %s135
    %p142 = scmp.eq.s32.totalorder %s20, 1
    %p143 = por %p141, %p142
    %p144 = scmp.ne.s32.totalorder %s135, %s136
    %p145 = scmp.eq.s32.totalorder %s20, 0
    %p146 = por %p144, %p145
    %p147 = scmp.ne.s32.totalorder %s135, %s136
    %p148 = scmp.eq.s32.totalorder %s21, 1
    %p149 = por %p147, %p148
    %p151 = scmp.ne.s32.totalorder %s136, %s150
    %p152 = scmp.eq.s32.totalorder %s21, 0
    %p153 = por %p151, %p152
    %s155 = sadd.s32 %s154, 1
    %p158 = scmp.eq.s32.totalorder %s15, 1
    %p159 = scmp.ne.s32.totalorder %s154, %s156
    %p160 = scmp.eq.s32.totalorder %s15, 0
    %p161 = por %p159, %p160
    %p162 = scmp.ne.s32.totalorder %s154, %s156
    %p163 = scmp.eq.s32.totalorder %s20, 1
    %p164 = por %p162, %p163
    %p165 = scmp.ne.s32.totalorder %s156, %s157
    %p166 = scmp.eq.s32.totalorder %s20, 0
    %p167 = por %p165, %p166
    %p168 = scmp.ne.s32.totalorder %s156, %s157
    %p169 = scmp.eq.s32.totalorder %s21, 1
    %p170 = por %p168, %p169
    %p172 = scmp.ne.s32.totalorder %s157, %s171
    %p173 = scmp.eq.s32.totalorder %s21, 0
    %p174 = por %p172, %p173
    %s176 = sadd.s32 %s175, 1
    %p179 = scmp.eq.s32.totalorder %s15, 1
    %p180 = scmp.ne.s32.totalorder %s175, %s177
    %p181 = scmp.eq.s32.totalorder %s15, 0
    %p182 = por %p180, %p181
    %p183 = scmp.ne.s32.totalorder %s175, %s177
    %p184 = scmp.eq.s32.totalorder %s20, 1
    %p185 = por %p183, %p184
    %p186 = scmp.ne.s32.totalorder %s177, %s178
    %p187 = scmp.eq.s32.totalorder %s20, 0
    %p188 = por %p186, %p187
    %p189 = scmp.ne.s32.totalorder %s177, %s178
    %p190 = scmp.eq.s32.totalorder %s21, 1
    %p191 = por %p189, %p190
    %p193 = scmp.ne.s32.totalorder %s178, %s192
    %p194 = scmp.eq.s32.totalorder %s21, 0
    %p195 = por %p193, %p194
    %s197 = sadd.s32 %s196, 1
    %p200 = scmp.eq.s32.totalorder %s15, 1
    %p201 = scmp.ne.s32.totalorder %s196, %s198
    %p202 = scmp.eq.s32.totalorder %s15, 0
    %p203 = por %p201, %p202
    %p204 = scmp.ne.s32.totalorder %s196, %s198
    %p205 = scmp.eq.s32.totalorder %s20, 1
    %p206 = por %p204, %p205
    %p207 = scmp.ne.s32.totalorder %s198, %s199
    %p208 = scmp.eq.s32.totalorder %s20, 0
    %p209 = por %p207, %p208
    %p210 = scmp.ne.s32.totalorder %s198, %s199
    %p211 = scmp.eq.s32.totalorder %s21, 1
    %p212 = por %p210, %p211
    %p214 = scmp.ne.s32.totalorder %s199, %s213
    %p215 = scmp.eq.s32.totalorder %s21, 0
    %p216 = por %p214, %p215
    %s217 = ssub.s32 %s15, %s22
    %p218 = scmp.eq.s32.totalorder %s217, 0
    %s220 = sadd.s32 %s219, 1
    %s221 = scalar_select %p218, %s219, %s220
    %p224 = pneg %p218
    %p225 = scmp.eq.s32.totalorder %s15, 1
    %p226 = por %p224, %p225
    %p227 = scmp.ne.s32.totalorder %s219, %s222
    %p228 = scmp.eq.s32.totalorder %s15, 0
    %p229 = por %p227, %p228
    %p230 = scmp.ne.s32.totalorder %s219, %s222
    %p231 = scmp.eq.s32.totalorder %s20, 1
    %p232 = por %p230, %p231
    %p233 = scmp.ne.s32.totalorder %s222, %s223
    %p234 = scmp.eq.s32.totalorder %s20, 0
    %p235 = por %p233, %p234
    %p236 = scmp.ne.s32.totalorder %s222, %s223
    %p237 = scmp.eq.s32.totalorder %s21, 1
    %p238 = por %p236, %p237
    %p240 = scmp.ne.s32.totalorder %s223, %s239
    %p241 = scmp.eq.s32.totalorder %s21, 0
    %p242 = por %p240, %p241
    %p243 = scmp.le.s32.totalorder 1, %s15
    %p244 = scmp.lt.s32.totalorder %s15, 3
    %p245 = pnand %p243, %p244
    %p246 = pneg %p245
    // Predicated region
    $region9: #{fcc_autoencoder_fused.1} parent=5 // pred_check
      _
    $region10: #{fcc_autoencoder_fused.1} parent=5 // pred_check_branch
      %248 = sbr.rel (%p245) target = $region12
    $region11: #{fcc_autoencoder_fused.1} parent=5 // pred_region
      %s249 = ssub.s32 %s15, 1
      // Predicated region
      $region13: #{fcc_autoencoder_fused.1} parent=11 // pred_check
        %p250 = pneg %p62
      $region14: #{fcc_autoencoder_fused.1} parent=11 // pred_check_branch
        %252 = sbr.rel (%p250) target = $region16
      $region15: #{fcc_autoencoder_fused.1} parent=11 // pred_region
        _
      $region16: #{fcc_autoencoder_fused.1} parent=11 // pred_fallthru
        _
      // Predicated region
      $region17: #{fcc_autoencoder_fused.1} parent=11 // pred_check
        %p253 = pneg %p83
      $region18: #{fcc_autoencoder_fused.1} parent=11 // pred_check_branch
        %255 = sbr.rel (%p253) target = $region20
      $region19: #{fcc_autoencoder_fused.1} parent=11 // pred_region
        _
      $region20: #{fcc_autoencoder_fused.1} parent=11 // pred_fallthru
        _
      // Predicated region
      $region21: #{fcc_autoencoder_fused.1} parent=11 // pred_check
        %p256 = pneg %p104
      $region22: #{fcc_autoencoder_fused.1} parent=11 // pred_check_branch
        %258 = sbr.rel (%p256) target = $region24
      $region23: #{fcc_autoencoder_fused.1} parent=11 // pred_region
        _
      $region24: #{fcc_autoencoder_fused.1} parent=11 // pred_fallthru
        _
      // Predicated region
      $region25: #{fcc_autoencoder_fused.1} parent=11 // pred_check
        %p259 = pneg %p125
      $region26: #{fcc_autoencoder_fused.1} parent=11 // pred_check_branch
        %261 = sbr.rel (%p259) target = $region28
      $region27: #{fcc_autoencoder_fused.1} parent=11 // pred_region
        _
      $region28: #{fcc_autoencoder_fused.1} parent=11 // pred_fallthru
        _
      // Predicated region
      $region29: #{fcc_autoencoder_fused.1} parent=11 // pred_check
        %p262 = pneg %p146
      $region30: #{fcc_autoencoder_fused.1} parent=11 // pred_check_branch
        %264 = sbr.rel (%p262) target = $region32
      $region31: #{fcc_autoencoder_fused.1} parent=11 // pred_region
        _
      $region32: #{fcc_autoencoder_fused.1} parent=11 // pred_fallthru
        _
      // Predicated region
      $region33: #{fcc_autoencoder_fused.1} parent=11 // pred_check
        %p265 = pneg %p167
      $region34: #{fcc_autoencoder_fused.1} parent=11 // pred_check_branch
        %267 = sbr.rel (%p265) target = $region36
      $region35: #{fcc_autoencoder_fused.1} parent=11 // pred_region
        _
      $region36: #{fcc_autoencoder_fused.1} parent=11 // pred_fallthru
        _
      // Predicated region
      $region37: #{fcc_autoencoder_fused.1} parent=11 // pred_check
        %p268 = pneg %p188
      $region38: #{fcc_autoencoder_fused.1} parent=11 // pred_check_branch
        %270 = sbr.rel (%p268) target = $region40
      $region39: #{fcc_autoencoder_fused.1} parent=11 // pred_region
        _
      $region40: #{fcc_autoencoder_fused.1} parent=11 // pred_fallthru
        _
      // Predicated region
      $region41: #{fcc_autoencoder_fused.1} parent=11 // pred_check
        %p271 = pneg %p209
      $region42: #{fcc_autoencoder_fused.1} parent=11 // pred_check_branch
        %273 = sbr.rel (%p271) target = $region44
      $region43: #{fcc_autoencoder_fused.1} parent=11 // pred_region
        _
      $region44: #{fcc_autoencoder_fused.1} parent=11 // pred_fallthru
        _
    $region12: #{fcc_autoencoder_fused.1} parent=5 // pred_fallthru
      _
    %p274 = scmp.lt.s32.totalorder %s15, 2
    // Predicated region
    $region45: #{fcc_autoencoder_fused.1} parent=5 // pred_check
      %p275 = pneg %p274
    $region46: #{fcc_autoencoder_fused.1} parent=5 // pred_check_branch
      %277 = sbr.rel (%p275) target = $region48
    $region47: #{fcc_autoencoder_fused.1} parent=5 // pred_region
      // Predicated region
      $region49: #{fcc_autoencoder_fused.1} parent=47 // pred_check
        %p278 = pneg %p35
      $region50: #{fcc_autoencoder_fused.1} parent=47 // pred_check_branch
        %280 = sbr.rel (%p278) target = $region52
      $region51: #{fcc_autoencoder_fused.1} parent=47 // pred_region
        %p281 = scmp.lt.s32.totalorder %s15, 1
        %s282 = scalar_select %p281, %s15, 1
        %s283 = smul.addr %s282, 8
        %s284 = scalar_lea.vmem %s0, %s283
      $region52: #{fcc_autoencoder_fused.1} parent=47 // pred_fallthru
        _
    $region48: #{fcc_autoencoder_fused.1} parent=5 // pred_fallthru
      _
    %p285 = scmp.le.s32.totalorder 1, %s15
    %p286 = scmp.lt.s32.totalorder %s15, 3
    %p287 = pnand %p285, %p286
    %p288 = pneg %p287
    // Predicated region
    $region53: #{fcc_autoencoder_fused.1} parent=5 // pred_check
      _
    $region54: #{fcc_autoencoder_fused.1} parent=5 // pred_check_branch
      %290 = sbr.rel (%p287) target = $region56
    $region55: #{fcc_autoencoder_fused.1} parent=5 // pred_region
      %s291 = ssub.s32 %s15, 1
      %p292 = scmp.lt.s32.totalorder %s20, 1
      %s293 = scalar_select %p292, %s20, 1
      %s294 = smul.addr %s293, 8
      %s295 = scalar_lea.vmem %s0, %s294
      %p296 = pneg %p41
      %p297 = pneg %p38
      %p298 = pneg %p62
      %p299 = pneg %p59
      %p300 = pneg %p83
      %p301 = pneg %p80
      %p302 = pneg %p104
      %p303 = pneg %p101
      %p304 = pneg %p125
      %p305 = pneg %p122
      %p306 = pneg %p146
      %p307 = pneg %p143
      %p308 = pneg %p167
      %p309 = pneg %p164
      %p310 = pneg %p188
      %p311 = pneg %p185
      %p312 = pneg %p209
      %p313 = pneg %p206
      %p314 = pneg %p235
      %p315 = pneg %p232
      %p316 = scmp.lt.s32.totalorder %s20, 1
      %s317 = scalar_select %p316, %s20, 1
      %s318 = smul.addr %s317, 8
      %s319 = scalar_lea.vmem %s9, %s318
      %p320 = scmp.lt.s32.totalorder %s20, 1
      %s321 = scalar_select %p320, %s20, 1
      %s322 = smul.addr %s321, 8
      %s323 = scalar_lea.vmem %s0, %s322
      %p324 = scmp.lt.s32.totalorder %s20, 1
      %s325 = scalar_select %p324, %s20, 1
      %s326 = smul.addr %s325, 8
      %s327 = scalar_lea.vmem %s9, %s326
      %v328 = vld [vmem:[%s323] sm:$0xff]
      %v329 = vld [vmem:[%s1] sm:$0xff]
      %v330 = vld [vmem:[%s1 + $0x8] sm:$0xff]
      %v331 = vld [vmem:[%s1 + $0x10] sm:$0xff]
      %v332 = vld [vmem:[%s1 + $0x18] sm:$0xff]
      %v333 = vld [vmem:[%s1 + $0x20] sm:$0xff]
      %v334 = vld [vmem:[%s1 + $0x28] sm:$0xff]
      %v335 = vld [vmem:[%s1 + $0x30] sm:$0xff]
      %v336 = vld [vmem:[%s1 + $0x38] sm:$0xff]
      %v337 = vld [vmem:[%s1 + $0x40] sm:$0xff]
      %v338 = vld [vmem:[%s1 + $0x48] sm:$0xff]
      %v339 = vld [vmem:[%s1 + $0x50] sm:$0xff]
      %v340 = vld [vmem:[%s1 + $0x58] sm:$0xff]
      %v341 = vld [vmem:[%s1 + $0x60] sm:$0xff]
      %v342 = vld [vmem:[%s1 + $0x68] sm:$0xff]
      %v343 = vld [vmem:[%s1 + $0x70] sm:$0xff]
      %v344 = vld [vmem:[%s1 + $0x78] sm:$0xff]
      %v345 = vld [vmem:[%s2] sm:$0x1]
      %v347 = vlaneseq
      %v348 = vshrl.u32 %v347, 7
      %v349 = vsub.s32 0, %v348
      %v350 = vrot.slane %v345, %v349
      %352 = vmatprep.subr.mxu0 0.0
      %353 = vmatpush1.msra.mxu0 %v344
      %354 = vmatprep.subr.mxu0 0.0
      %355 = vmatpush1.msra.mxu0 %v343
      %356 = vmatprep.subr.mxu0 0.0
      %357 = vmatpush1.msra.mxu0 %v342
      %358 = vmatprep.subr.mxu0 0.0
      %359 = vmatpush1.msra.mxu0 %v341
      %360 = vmatprep.subr.mxu0 0.0
      %361 = vmatpush1.msra.mxu0 %v340
      %362 = vmatprep.subr.mxu0 0.0
      %363 = vmatpush1.msra.mxu0 %v339
      %364 = vmatprep.subr.mxu0 0.0
      %365 = vmatpush1.msra.mxu0 %v338
      %366 = vmatprep.subr.mxu0 0.0
      %367 = vmatpush1.msra.mxu0 %v337
      %368 = vmatprep.subr.mxu0 0.0
      %369 = vmatpush1.msra.mxu0 %v336
      %370 = vmatprep.subr.mxu0 0.0
      %371 = vmatpush1.msra.mxu0 %v335
      %372 = vmatprep.subr.mxu0 0.0
      %373 = vmatpush1.msra.mxu0 %v334
      %374 = vmatprep.subr.mxu0 0.0
      %375 = vmatpush1.msra.mxu0 %v333
      %376 = vmatprep.subr.mxu0 0.0
      %377 = vmatpush1.msra.mxu0 %v332
      %378 = vmatprep.subr.mxu0 0.0
      %379 = vmatpush1.msra.mxu0 %v331
      %380 = vmatprep.subr.mxu0 0.0
      %381 = vmatpush1.msra.mxu0 %v330
      %382 = vmatprep.subr.mxu0 0.0
      %383 = vmatpush1.msra.mxu0 %v329
      %384 = vmatprep.subr.mxu0 0.0
      %385 = vmatpush2.msra.mxu0 0.0
      %386 = vmatprep.subr.mxu0 0.0
      %387 = vmatpush2.msra.mxu0 0.0
      %388 = vmatprep.subr.mxu0 0.0
      %389 = vmatpush2.msra.mxu0 0.0
      %390 = vmatprep.subr.mxu0 0.0
      %391 = vmatpush2.msra.mxu0 0.0
      %392 = vmatprep.subr.mxu0 0.0
      %393 = vmatpush2.msra.mxu0 0.0
      %394 = vmatprep.subr.mxu0 0.0
      %395 = vmatpush2.msra.mxu0 0.0
      %396 = vmatprep.subr.mxu0 0.0
      %397 = vmatpush2.msra.mxu0 0.0
      %398 = vmatprep.subr.mxu0 0.0
      %399 = vmatpush2.msra.mxu0 0.0
      %400 = vmatprep.subr.mxu0 0.0
      %401 = vmatpush2.msra.mxu0 0.0
      %402 = vmatprep.subr.mxu0 0.0
      %403 = vmatpush2.msra.mxu0 0.0
      %404 = vmatprep.subr.mxu0 0.0
      %405 = vmatpush2.msra.mxu0 0.0
      %406 = vmatprep.subr.mxu0 0.0
      %407 = vmatpush2.msra.mxu0 0.0
      %408 = vmatprep.subr.mxu0 0.0
      %409 = vmatpush2.msra.mxu0 0.0
      %410 = vmatprep.subr.mxu0 0.0
      %411 = vmatpush2.msra.mxu0 0.0
      %412 = vmatprep.subr.mxu0 0.0
      %413 = vmatpush2.msra.mxu0 0.0
      %414 = vmatprep.subr.mxu0 0.0
      %415 = vmatpush2.msra.mxu0 0.0
      %416 = vmatprep.mubr.f32.mxu0 0.0
      %417 = vmatmul.mubr.f32.gmra.mxu0 %v328
      %v418 = vpop.f32.mrf.mxu0
      %v419 = vadd.f32 %v350, %v418
      %v420 = vpop.f32.mrf.mxu0
      %421 = vdwg.mxu0
      %v422 = vmax.f32 %v419, 0.0
      %v423 = vld [vmem:[%s3] sm:$0xff]
      %v424 = vld [vmem:[%s3 + $0x8] sm:$0xff]
      %v425 = vld [vmem:[%s3 + $0x10] sm:$0xff]
      %v426 = vld [vmem:[%s3 + $0x18] sm:$0xff]
      %v427 = vld [vmem:[%s3 + $0x20] sm:$0xff]
      %v428 = vld [vmem:[%s3 + $0x28] sm:$0xff]
      %v429 = vld [vmem:[%s3 + $0x30] sm:$0xff]
      %v430 = vld [vmem:[%s3 + $0x38] sm:$0xff]
      %v431 = vld [vmem:[%s3 + $0x40] sm:$0xff]
      %v432 = vld [vmem:[%s3 + $0x48] sm:$0xff]
      %v433 = vld [vmem:[%s3 + $0x50] sm:$0xff]
      %v434 = vld [vmem:[%s3 + $0x58] sm:$0xff]
      %v435 = vld [vmem:[%s3 + $0x60] sm:$0xff]
      %v436 = vld [vmem:[%s3 + $0x68] sm:$0xff]
      %v437 = vld [vmem:[%s3 + $0x70] sm:$0xff]
      %v438 = vld [vmem:[%s3 + $0x78] sm:$0xff]
      %v439 = vld [vmem:[%s4] sm:$0x1]
      %v441 = vlaneseq
      %v442 = vshrl.u32 %v441, 7
      %v443 = vsub.s32 0, %v442
      %v444 = vrot.slane %v439, %v443
      %446 = vmatprep.subr.mxu0 0.0
      %447 = vmatpush1.msra.mxu0 %v438
      %448 = vmatprep.subr.mxu0 0.0
      %449 = vmatpush1.msra.mxu0 %v437
      %450 = vmatprep.subr.mxu0 0.0
      %451 = vmatpush1.msra.mxu0 %v436
      %452 = vmatprep.subr.mxu0 0.0
      %453 = vmatpush1.msra.mxu0 %v435
      %454 = vmatprep.subr.mxu0 0.0
      %455 = vmatpush1.msra.mxu0 %v434
      %456 = vmatprep.subr.mxu0 0.0
      %457 = vmatpush1.msra.mxu0 %v433
      %458 = vmatprep.subr.mxu0 0.0
      %459 = vmatpush1.msra.mxu0 %v432
      %460 = vmatprep.subr.mxu0 0.0
      %461 = vmatpush1.msra.mxu0 %v431
      %462 = vmatprep.subr.mxu0 0.0
      %463 = vmatpush1.msra.mxu0 %v430
      %464 = vmatprep.subr.mxu0 0.0
      %465 = vmatpush1.msra.mxu0 %v429
      %466 = vmatprep.subr.mxu0 0.0
      %467 = vmatpush1.msra.mxu0 %v428
      %468 = vmatprep.subr.mxu0 0.0
      %469 = vmatpush1.msra.mxu0 %v427
      %470 = vmatprep.subr.mxu0 0.0
      %471 = vmatpush1.msra.mxu0 %v426
      %472 = vmatprep.subr.mxu0 0.0
      %473 = vmatpush1.msra.mxu0 %v425
      %474 = vmatprep.subr.mxu0 0.0
      %475 = vmatpush1.msra.mxu0 %v424
      %476 = vmatprep.subr.mxu0 0.0
      %477 = vmatpush1.msra.mxu0 %v423
      %478 = vmatprep.subr.mxu0 0.0
      %479 = vmatpush2.msra.mxu0 0.0
      %480 = vmatprep.subr.mxu0 0.0
      %481 = vmatpush2.msra.mxu0 0.0
      %482 = vmatprep.subr.mxu0 0.0
      %483 = vmatpush2.msra.mxu0 0.0
      %484 = vmatprep.subr.mxu0 0.0
      %485 = vmatpush2.msra.mxu0 0.0
      %486 = vmatprep.subr.mxu0 0.0
      %487 = vmatpush2.msra.mxu0 0.0
      %488 = vmatprep.subr.mxu0 0.0
      %489 = vmatpush2.msra.mxu0 0.0
      %490 = vmatprep.subr.mxu0 0.0
      %491 = vmatpush2.msra.mxu0 0.0
      %492 = vmatprep.subr.mxu0 0.0
      %493 = vmatpush2.msra.mxu0 0.0
      %494 = vmatprep.subr.mxu0 0.0
      %495 = vmatpush2.msra.mxu0 0.0
      %496 = vmatprep.subr.mxu0 0.0
      %497 = vmatpush2.msra.mxu0 0.0
      %498 = vmatprep.subr.mxu0 0.0
      %499 = vmatpush2.msra.mxu0 0.0
      %500 = vmatprep.subr.mxu0 0.0
      %501 = vmatpush2.msra.mxu0 0.0
      %502 = vmatprep.subr.mxu0 0.0
      %503 = vmatpush2.msra.mxu0 0.0
      %504 = vmatprep.subr.mxu0 0.0
      %505 = vmatpush2.msra.mxu0 0.0
      %506 = vmatprep.subr.mxu0 0.0
      %507 = vmatpush2.msra.mxu0 0.0
      %508 = vmatprep.subr.mxu0 0.0
      %509 = vmatpush2.msra.mxu0 0.0
      %510 = vmatprep.mubr.f32.mxu0 0.0
      %511 = vmatmul.mubr.f32.gmra.mxu0 %v422
      %v512 = vpop.f32.mrf.mxu0
      %v513 = vadd.f32 %v444, %v512
      %v514 = vpop.f32.mrf.mxu0
      %515 = vdwg.mxu0
      %v516 = vmax.f32 %v513, 0.0
      %v517 = vld [vmem:[%s5] sm:$0xff]
      %v518 = vld [vmem:[%s5 + $0x8] sm:$0xff]
      %v519 = vld [vmem:[%s5 + $0x10] sm:$0xff]
      %v520 = vld [vmem:[%s5 + $0x18] sm:$0xff]
      %v521 = vld [vmem:[%s5 + $0x20] sm:$0xff]
      %v522 = vld [vmem:[%s5 + $0x28] sm:$0xff]
      %v523 = vld [vmem:[%s5 + $0x30] sm:$0xff]
      %v524 = vld [vmem:[%s5 + $0x38] sm:$0xff]
      %v525 = vld [vmem:[%s5 + $0x40] sm:$0xff]
      %v526 = vld [vmem:[%s5 + $0x48] sm:$0xff]
      %v527 = vld [vmem:[%s5 + $0x50] sm:$0xff]
      %v528 = vld [vmem:[%s5 + $0x58] sm:$0xff]
      %v529 = vld [vmem:[%s5 + $0x60] sm:$0xff]
      %v530 = vld [vmem:[%s5 + $0x68] sm:$0xff]
      %v531 = vld [vmem:[%s5 + $0x70] sm:$0xff]
      %v532 = vld [vmem:[%s5 + $0x78] sm:$0xff]
      %v533 = vld [vmem:[%s6] sm:$0x1]
      %v535 = vlaneseq
      %v536 = vshrl.u32 %v535, 7
      %v537 = vsub.s32 0, %v536
      %v538 = vrot.slane %v533, %v537
      %540 = vmatprep.subr.mxu0 0.0
      %541 = vmatpush1.msra.mxu0 %v532
      %542 = vmatprep.subr.mxu0 0.0
      %543 = vmatpush1.msra.mxu0 %v531
      %544 = vmatprep.subr.mxu0 0.0
      %545 = vmatpush1.msra.mxu0 %v530
      %546 = vmatprep.subr.mxu0 0.0
      %547 = vmatpush1.msra.mxu0 %v529
      %548 = vmatprep.subr.mxu0 0.0
      %549 = vmatpush1.msra.mxu0 %v528
      %550 = vmatprep.subr.mxu0 0.0
      %551 = vmatpush1.msra.mxu0 %v527
      %552 = vmatprep.subr.mxu0 0.0
      %553 = vmatpush1.msra.mxu0 %v526
      %554 = vmatprep.subr.mxu0 0.0
      %555 = vmatpush1.msra.mxu0 %v525
      %556 = vmatprep.subr.mxu0 0.0
      %557 = vmatpush1.msra.mxu0 %v524
      %558 = vmatprep.subr.mxu0 0.0
      %559 = vmatpush1.msra.mxu0 %v523
      %560 = vmatprep.subr.mxu0 0.0
      %561 = vmatpush1.msra.mxu0 %v522
      %562 = vmatprep.subr.mxu0 0.0
      %563 = vmatpush1.msra.mxu0 %v521
      %564 = vmatprep.subr.mxu0 0.0
      %565 = vmatpush1.msra.mxu0 %v520
      %566 = vmatprep.subr.mxu0 0.0
      %567 = vmatpush1.msra.mxu0 %v519
      %568 = vmatprep.subr.mxu0 0.0
      %569 = vmatpush1.msra.mxu0 %v518
      %570 = vmatprep.subr.mxu0 0.0
      %571 = vmatpush1.msra.mxu0 %v517
      %572 = vmatprep.subr.mxu0 0.0
      %573 = vmatpush2.msra.mxu0 0.0
      %574 = vmatprep.subr.mxu0 0.0
      %575 = vmatpush2.msra.mxu0 0.0
      %576 = vmatprep.subr.mxu0 0.0
      %577 = vmatpush2.msra.mxu0 0.0
      %578 = vmatprep.subr.mxu0 0.0
      %579 = vmatpush2.msra.mxu0 0.0
      %580 = vmatprep.subr.mxu0 0.0
      %581 = vmatpush2.msra.mxu0 0.0
      %582 = vmatprep.subr.mxu0 0.0
      %583 = vmatpush2.msra.mxu0 0.0
      %584 = vmatprep.subr.mxu0 0.0
      %585 = vmatpush2.msra.mxu0 0.0
      %586 = vmatprep.subr.mxu0 0.0
      %587 = vmatpush2.msra.mxu0 0.0
      %588 = vmatprep.subr.mxu0 0.0
      %589 = vmatpush2.msra.mxu0 0.0
      %590 = vmatprep.subr.mxu0 0.0
      %591 = vmatpush2.msra.mxu0 0.0
      %592 = vmatprep.subr.mxu0 0.0
      %593 = vmatpush2.msra.mxu0 0.0
      %594 = vmatprep.subr.mxu0 0.0
      %595 = vmatpush2.msra.mxu0 0.0
      %596 = vmatprep.subr.mxu0 0.0
      %597 = vmatpush2.msra.mxu0 0.0
      %598 = vmatprep.subr.mxu0 0.0
      %599 = vmatpush2.msra.mxu0 0.0
      %600 = vmatprep.subr.mxu0 0.0
      %601 = vmatpush2.msra.mxu0 0.0
      %602 = vmatprep.subr.mxu0 0.0
      %603 = vmatpush2.msra.mxu0 0.0
      %604 = vmatprep.mubr.f32.mxu0 0.0
      %605 = vmatmul.mubr.f32.gmra.mxu0 %v516
      %v606 = vpop.f32.mrf.mxu0
      %v607 = vadd.f32 %v538, %v606
      %v608 = vpop.f32.mrf.mxu0
      %609 = vdwg.mxu0
      %v610 = vmax.f32 %v607, 0.0
      %v611 = vld [vmem:[%s7] sm:$0xff]
      %v612 = vld [vmem:[%s7 + $0x8] sm:$0xff]
      %v613 = vld [vmem:[%s7 + $0x10] sm:$0xff]
      %v614 = vld [vmem:[%s7 + $0x18] sm:$0xff]
      %v615 = vld [vmem:[%s7 + $0x20] sm:$0xff]
      %v616 = vld [vmem:[%s7 + $0x28] sm:$0xff]
      %v617 = vld [vmem:[%s7 + $0x30] sm:$0xff]
      %v618 = vld [vmem:[%s7 + $0x38] sm:$0xff]
      %v619 = vld [vmem:[%s7 + $0x40] sm:$0xff]
      %v620 = vld [vmem:[%s7 + $0x48] sm:$0xff]
      %v621 = vld [vmem:[%s7 + $0x50] sm:$0xff]
      %v622 = vld [vmem:[%s7 + $0x58] sm:$0xff]
      %v623 = vld [vmem:[%s7 + $0x60] sm:$0xff]
      %v624 = vld [vmem:[%s7 + $0x68] sm:$0xff]
      %v625 = vld [vmem:[%s7 + $0x70] sm:$0xff]
      %v626 = vld [vmem:[%s7 + $0x78] sm:$0xff]
      %v627 = vld [vmem:[%s8] sm:$0x1]
      %v629 = vlaneseq
      %v630 = vshrl.u32 %v629, 7
      %v631 = vsub.s32 0, %v630
      %v632 = vrot.slane %v627, %v631
      %634 = vmatprep.subr.mxu0 0.0
      %635 = vmatpush1.msra.mxu0 %v626
      %636 = vmatprep.subr.mxu0 0.0
      %637 = vmatpush1.msra.mxu0 %v625
      %638 = vmatprep.subr.mxu0 0.0
      %639 = vmatpush1.msra.mxu0 %v624
      %640 = vmatprep.subr.mxu0 0.0
      %641 = vmatpush1.msra.mxu0 %v623
      %642 = vmatprep.subr.mxu0 0.0
      %643 = vmatpush1.msra.mxu0 %v622
      %644 = vmatprep.subr.mxu0 0.0
      %645 = vmatpush1.msra.mxu0 %v621
      %646 = vmatprep.subr.mxu0 0.0
      %647 = vmatpush1.msra.mxu0 %v620
      %648 = vmatprep.subr.mxu0 0.0
      %649 = vmatpush1.msra.mxu0 %v619
      %650 = vmatprep.subr.mxu0 0.0
      %651 = vmatpush1.msra.mxu0 %v618
      %652 = vmatprep.subr.mxu0 0.0
      %653 = vmatpush1.msra.mxu0 %v617
      %654 = vmatprep.subr.mxu0 0.0
      %655 = vmatpush1.msra.mxu0 %v616
      %656 = vmatprep.subr.mxu0 0.0
      %657 = vmatpush1.msra.mxu0 %v615
      %658 = vmatprep.subr.mxu0 0.0
      %659 = vmatpush1.msra.mxu0 %v614
      %660 = vmatprep.subr.mxu0 0.0
      %661 = vmatpush1.msra.mxu0 %v613
      %662 = vmatprep.subr.mxu0 0.0
      %663 = vmatpush1.msra.mxu0 %v612
      %664 = vmatprep.subr.mxu0 0.0
      %665 = vmatpush1.msra.mxu0 %v611
      %666 = vmatprep.subr.mxu0 0.0
      %667 = vmatpush2.msra.mxu0 0.0
      %668 = vmatprep.subr.mxu0 0.0
      %669 = vmatpush2.msra.mxu0 0.0
      %670 = vmatprep.subr.mxu0 0.0
      %671 = vmatpush2.msra.mxu0 0.0
      %672 = vmatprep.subr.mxu0 0.0
      %673 = vmatpush2.msra.mxu0 0.0
      %674 = vmatprep.subr.mxu0 0.0
      %675 = vmatpush2.msra.mxu0 0.0
      %676 = vmatprep.subr.mxu0 0.0
      %677 = vmatpush2.msra.mxu0 0.0
      %678 = vmatprep.subr.mxu0 0.0
      %679 = vmatpush2.msra.mxu0 0.0
      %680 = vmatprep.subr.mxu0 0.0
      %681 = vmatpush2.msra.mxu0 0.0
      %682 = vmatprep.subr.mxu0 0.0
      %683 = vmatpush2.msra.mxu0 0.0
      %684 = vmatprep.subr.mxu0 0.0
      %685 = vmatpush2.msra.mxu0 0.0
      %686 = vmatprep.subr.mxu0 0.0
      %687 = vmatpush2.msra.mxu0 0.0
      %688 = vmatprep.subr.mxu0 0.0
      %689 = vmatpush2.msra.mxu0 0.0
      %690 = vmatprep.subr.mxu0 0.0
      %691 = vmatpush2.msra.mxu0 0.0
      %692 = vmatprep.subr.mxu0 0.0
      %693 = vmatpush2.msra.mxu0 0.0
      %694 = vmatprep.subr.mxu0 0.0
      %695 = vmatpush2.msra.mxu0 0.0
      %696 = vmatprep.subr.mxu0 0.0
      %697 = vmatpush2.msra.mxu0 0.0
      %698 = vmatprep.mubr.f32.mxu0 0.0
      %699 = vmatmul.mubr.f32.gmra.mxu0 %v610
      %v700 = vpop.f32.mrf.mxu0
      %v701 = vadd.f32 %v632, %v700
      %v702 = vpop.f32.mrf.mxu0
      %703 = vdwg.mxu0
      %v704 = vmax.f32 %v701, 0.0
      %705 = vst [vmem:[%s327] sm:$0xff] %v704
      %p706 = scmp.lt.s32.totalorder %s20, 1
      %s707 = scalar_select %p706, %s20, 1
      %s708 = smul.addr %s707, 8
      %s709 = scalar_lea.vmem %s9, %s708
      // Predicated region
      $region57: #{fcc_autoencoder_fused.1} parent=55 // pred_check
        %p710 = pneg %p232
      $region58: #{fcc_autoencoder_fused.1} parent=55 // pred_check_branch
        %712 = sbr.rel (%p710) target = $region60
      $region59: #{fcc_autoencoder_fused.1} parent=55 // pred_region
        _
      $region60: #{fcc_autoencoder_fused.1} parent=55 // pred_fallthru
        _
    $region56: #{fcc_autoencoder_fused.1} parent=5 // pred_fallthru
      _
    %p713 = scmp.le.s32.totalorder 2, %s15
    // Predicated region
    $region61: #{fcc_autoencoder_fused.1} parent=5 // pred_check
      %p714 = pneg %p713
    $region62: #{fcc_autoencoder_fused.1} parent=5 // pred_check_branch
      %716 = sbr.rel (%p714) target = $region64
    $region63: #{fcc_autoencoder_fused.1} parent=5 // pred_region
      %s717 = ssub.s32 %s15, 2
      // Predicated region
      $region65: #{fcc_autoencoder_fused.1} parent=63 // pred_check
        %p718 = pneg %p238
      $region66: #{fcc_autoencoder_fused.1} parent=63 // pred_check_branch
        %720 = sbr.rel (%p718) target = $region68
      $region67: #{fcc_autoencoder_fused.1} parent=63 // pred_region
        %p721 = scmp.lt.s32.totalorder %s21, 1
        %s722 = scalar_select %p721, %s21, 1
        %s723 = smul.addr %s722, 8
        %s724 = scalar_lea.vmem %s9, %s723
      $region68: #{fcc_autoencoder_fused.1} parent=63 // pred_fallthru
        _
    $region64: #{fcc_autoencoder_fused.1} parent=5 // pred_fallthru
      _
  $region6: #{fcc_autoencoder_fused.1} parent=0 // loop_footer
    %s19 = sadd.s32 1, %s15
  $region7: #{fcc_autoencoder_fused.1} parent=0 // loop_footer_branch
    %14 = sbr.rel target = $region3
  $region8: #{fcc_autoencoder_fused.1} parent=0 // loop_exit
    _

// kernel: fcc_autoencoder_fused.1
$region0: #{fcc_autoencoder_fused.1}
  #allocation0 [shape = 'u32[]', space=smem, size = 0x4, offset = 0x4, fixed_abs, tag = 'smem constant byte address 0x4 - core index']
  #allocation1 [shape = 'u32[144,128]{1,0:T(1,128)}', space=vmem, size = 0x12000, scoped, tag = 'internal scratch']
  %s0 = inlined_call_operand.vmem [shape: f32[16,128], index: 0, kind: input, shape index: {}]
  %s1 = inlined_call_operand.vmem [shape: f32[128,128], index: 1, kind: input, shape index: {}]
  %s2 = inlined_call_operand.vmem [shape: f32[1,128], index: 2, kind: input, shape index: {}]
  %s3 = inlined_call_operand.vmem [shape: f32[128,128], index: 3, kind: input, shape index: {}]
  %s4 = inlined_call_operand.vmem [shape: f32[1,128], index: 4, kind: input, shape index: {}]
  %s5 = inlined_call_operand.vmem [shape: f32[128,128], index: 5, kind: input, shape index: {}]
  %s6 = inlined_call_operand.vmem [shape: f32[1,128], index: 6, kind: input, shape index: {}]
  %s7 = inlined_call_operand.vmem [shape: f32[128,128], index: 7, kind: input, shape index: {}]
  %s8 = inlined_call_operand.vmem [shape: f32[1,128], index: 8, kind: input, shape index: {}]
  %s9 = inlined_call_operand.vmem [shape: f32[16,128], index: 9, kind: output, shape index: {}]
  %s10 = sld [smem:[#allocation0]]
  $region69: #{fcc_autoencoder_fused.1} parent=0
    _
  %s12 = ssub.s32 1, %s10
  %s13 = scalar_select 0, %s12, %s10
  loop: start=0, step=1, limit=4
  $region2: #{fcc_autoencoder_fused.1} parent=0 // loop_pre_header
    _
  $region3: #{fcc_autoencoder_fused.1} parent=0 // loop_header
    %s15 = sphi 0, %s19
    %p16 = scmp.ge.s32.totalorder %s15, 4
    %s25 = sphi 0, %s27
    %s28 = sphi 0, %s25
    %s29 = sphi 0, %s28
    %s45 = sphi 0, %s29
    %s49 = sphi 0, %s49
    %s51 = sphi 0, %s49
    %s52 = sphi 0, %s51
    %s66 = sphi 0, %s52
    %s70 = sphi 0, %s70
    %s72 = sphi 0, %s70
    %s73 = sphi 0, %s72
    %s87 = sphi 0, %s73
    %s91 = sphi 0, %s91
    %s93 = sphi 0, %s91
    %s94 = sphi 0, %s93
    %s108 = sphi 0, %s94
    %s112 = sphi 0, %s112
    %s114 = sphi 0, %s112
    %s115 = sphi 0, %s114
    %s129 = sphi 0, %s115
    %s133 = sphi 0, %s133
    %s135 = sphi 0, %s133
    %s136 = sphi 0, %s135
    %s150 = sphi 0, %s136
    %s154 = sphi 0, %s154
    %s156 = sphi 0, %s154
    %s157 = sphi 0, %s156
    %s171 = sphi 0, %s157
    %s175 = sphi 0, %s175
    %s177 = sphi 0, %s175
    %s178 = sphi 0, %s177
    %s192 = sphi 0, %s178
    %s196 = sphi 0, %s196
    %s198 = sphi 0, %s196
    %s199 = sphi 0, %s198
    %s213 = sphi 0, %s199
    %s219 = sphi 0, %s221
    %s222 = sphi 0, %s219
    %s223 = sphi 0, %s222
    %s239 = sphi 0, %s223
  $region4: #{fcc_autoencoder_fused.1} parent=0 // loop_header_branch
    %18 = sbr.rel (%p16) target = $region8
  $region5: #{fcc_autoencoder_fused.1} parent=0 // loop_body
    %s20 = ssub.s32 %s15, 1
    %s21 = ssub.s32 %s15, 2
    %s22 = sadd.s32 %s15, 1
    %s23 = ssub.s32 %s15, %s22
    %p24 = scmp.eq.s32.totalorder %s23, 0
    %s26 = sadd.s32 %s25, 1
    %s27 = scalar_select %p24, %s25, %s26
    %p30 = pneg %p24
    %p31 = scmp.eq.s32.totalorder %s15, 1
    %p32 = por %p30, %p31
    %p33 = scmp.ne.s32.totalorder %s25, %s28
    %p34 = scmp.eq.s32.totalorder %s15, 0
    %p35 = por %p33, %p34
    %p36 = scmp.ne.s32.totalorder %s25, %s28
    %p37 = scmp.eq.s32.totalorder %s20, 1
    %p38 = por %p36, %p37
    %p39 = scmp.ne.s32.totalorder %s28, %s29
    %p40 = scmp.eq.s32.totalorder %s20, 0
    %p41 = por %p39, %p40
    %p42 = scmp.ne.s32.totalorder %s28, %s29
    %p43 = scmp.eq.s32.totalorder %s21, 1
    %p44 = por %p42, %p43
    %p46 = scmp.ne.s32.totalorder %s29, %s45
    %p47 = scmp.eq.s32.totalorder %s21, 0
    %p48 = por %p46, %p47
    %s50 = sadd.s32 %s49, 1
    %p53 = scmp.eq.s32.totalorder %s15, 1
    %p54 = scmp.ne.s32.totalorder %s49, %s51
    %p55 = scmp.eq.s32.totalorder %s15, 0
    %p56 = por %p54, %p55
    %p57 = scmp.ne.s32.totalorder %s49, %s51
    %p58 = scmp.eq.s32.totalorder %s20, 1
    %p59 = por %p57, %p58
    %p60 = scmp.ne.s32.totalorder %s51, %s52
    %p61 = scmp.eq.s32.totalorder %s20, 0
    %p62 = por %p60, %p61
    %p63 = scmp.ne.s32.totalorder %s51, %s52
    %p64 = scmp.eq.s32.totalorder %s21, 1
    %p65 = por %p63, %p64
    %p67 = scmp.ne.s32.totalorder %s52, %s66
    %p68 = scmp.eq.s32.totalorder %s21, 0
    %p69 = por %p67, %p68
    %s71 = sadd.s32 %s70, 1
    %p74 = scmp.eq.s32.totalorder %s15, 1
    %p75 = scmp.ne.s32.totalorder %s70, %s72
    %p76 = scmp.eq.s32.totalorder %s15, 0
    %p77 = por %p75, %p76
    %p78 = scmp.ne.s32.totalorder %s70, %s72
    %p79 = scmp.eq.s32.totalorder %s20, 1
    %p80 = por %p78, %p79
    %p81 = scmp.ne.s32.totalorder %s72, %s73
    %p82 = scmp.eq.s32.totalorder %s20, 0
    %p83 = por %p81, %p82
    %p84 = scmp.ne.s32.totalorder %s72, %s73
    %p85 = scmp.eq.s32.totalorder %s21, 1
    %p86 = por %p84, %p85
    %p88 = scmp.ne.s32.totalorder %s73, %s87
    %p89 = scmp.eq.s32.totalorder %s21, 0
    %p90 = por %p88, %p89
    %s92 = sadd.s32 %s91, 1
    %p95 = scmp.eq.s32.totalorder %s15, 1
    %p96 = scmp.ne.s32.totalorder %s91, %s93
    %p97 = scmp.eq.s32.totalorder %s15, 0
    %p98 = por %p96, %p97
    %p99 = scmp.ne.s32.totalorder %s91, %s93
    %p100 = scmp.eq.s32.totalorder %s20, 1
    %p101 = por %p99, %p100
    %p102 = scmp.ne.s32.totalorder %s93, %s94
    %p103 = scmp.eq.s32.totalorder %s20, 0
    %p104 = por %p102, %p103
    %p105 = scmp.ne.s32.totalorder %s93, %s94
    %p106 = scmp.eq.s32.totalorder %s21, 1
    %p107 = por %p105, %p106
    %p109 = scmp.ne.s32.totalorder %s94, %s108
    %p110 = scmp.eq.s32.totalorder %s21, 0
    %p111 = por %p109, %p110
    %s113 = sadd.s32 %s112, 1
    %p116 = scmp.eq.s32.totalorder %s15, 1
    %p117 = scmp.ne.s32.totalorder %s112, %s114
    %p118 = scmp.eq.s32.totalorder %s15, 0
    %p119 = por %p117, %p118
    %p120 = scmp.ne.s32.totalorder %s112, %s114
    %p121 = scmp.eq.s32.totalorder %s20, 1
    %p122 = por %p120, %p121
    %p123 = scmp.ne.s32.totalorder %s114, %s115
    %p124 = scmp.eq.s32.totalorder %s20, 0
    %p125 = por %p123, %p124
    %p126 = scmp.ne.s32.totalorder %s114, %s115
    %p127 = scmp.eq.s32.totalorder %s21, 1
    %p128 = por %p126, %p127
    %p130 = scmp.ne.s32.totalorder %s115, %s129
    %p131 = scmp.eq.s32.totalorder %s21, 0
    %p132 = por %p130, %p131
    %s134 = sadd.s32 %s133, 1
    %p137 = scmp.eq.s32.totalorder %s15, 1
    %p138 = scmp.ne.s32.totalorder %s133, %s135
    %p139 = scmp.eq.s32.totalorder %s15, 0
    %p140 = por %p138, %p139
    %p141 = scmp.ne.s32.totalorder %s133, %s135
    %p142 = scmp.eq.s32.totalorder %s20, 1
    %p143 = por %p141, %p142
    %p144 = scmp.ne.s32.totalorder %s135, %s136
    %p145 = scmp.eq.s32.totalorder %s20, 0
    %p146 = por %p144, %p145
    %p147 = scmp.ne.s32.totalorder %s135, %s136
    %p148 = scmp.eq.s32.totalorder %s21, 1
    %p149 = por %p147, %p148
    %p151 = scmp.ne.s32.totalorder %s136, %s150
    %p152 = scmp.eq.s32.totalorder %s21, 0
    %p153 = por %p151, %p152
    %s155 = sadd.s32 %s154, 1
    %p158 = scmp.eq.s32.totalorder %s15, 1
    %p159 = scmp.ne.s32.totalorder %s154, %s156
    %p160 = scmp.eq.s32.totalorder %s15, 0
    %p161 = por %p159, %p160
    %p162 = scmp.ne.s32.totalorder %s154, %s156
    %p163 = scmp.eq.s32.totalorder %s20, 1
    %p164 = por %p162, %p163
    %p165 = scmp.ne.s32.totalorder %s156, %s157
    %p166 = scmp.eq.s32.totalorder %s20, 0
    %p167 = por %p165, %p166
    %p168 = scmp.ne.s32.totalorder %s156, %s157
    %p169 = scmp.eq.s32.totalorder %s21, 1
    %p170 = por %p168, %p169
    %p172 = scmp.ne.s32.totalorder %s157, %s171
    %p173 = scmp.eq.s32.totalorder %s21, 0
    %p174 = por %p172, %p173
    %s176 = sadd.s32 %s175, 1
    %p179 = scmp.eq.s32.totalorder %s15, 1
    %p180 = scmp.ne.s32.totalorder %s175, %s177
    %p181 = scmp.eq.s32.totalorder %s15, 0
    %p182 = por %p180, %p181
    %p183 = scmp.ne.s32.totalorder %s175, %s177
    %p184 = scmp.eq.s32.totalorder %s20, 1
    %p185 = por %p183, %p184
    %p186 = scmp.ne.s32.totalorder %s177, %s178
    %p187 = scmp.eq.s32.totalorder %s20, 0
    %p188 = por %p186, %p187
    %p189 = scmp.ne.s32.totalorder %s177, %s178
    %p190 = scmp.eq.s32.totalorder %s21, 1
    %p191 = por %p189, %p190
    %p193 = scmp.ne.s32.totalorder %s178, %s192
    %p194 = scmp.eq.s32.totalorder %s21, 0
    %p195 = por %p193, %p194
    %s197 = sadd.s32 %s196, 1
    %p200 = scmp.eq.s32.totalorder %s15, 1
    %p201 = scmp.ne.s32.totalorder %s196, %s198
    %p202 = scmp.eq.s32.totalorder %s15, 0
    %p203 = por %p201, %p202
    %p204 = scmp.ne.s32.totalorder %s196, %s198
    %p205 = scmp.eq.s32.totalorder %s20, 1
    %p206 = por %p204, %p205
    %p207 = scmp.ne.s32.totalorder %s198, %s199
    %p208 = scmp.eq.s32.totalorder %s20, 0
    %p209 = por %p207, %p208
    %p210 = scmp.ne.s32.totalorder %s198, %s199
    %p211 = scmp.eq.s32.totalorder %s21, 1
    %p212 = por %p210, %p211
    %p214 = scmp.ne.s32.totalorder %s199, %s213
    %p215 = scmp.eq.s32.totalorder %s21, 0
    %p216 = por %p214, %p215
    %s217 = ssub.s32 %s15, %s22
    %p218 = scmp.eq.s32.totalorder %s217, 0
    %s220 = sadd.s32 %s219, 1
    %s221 = scalar_select %p218, %s219, %s220
    %p224 = pneg %p218
    %p225 = scmp.eq.s32.totalorder %s15, 1
    %p226 = por %p224, %p225
    %p227 = scmp.ne.s32.totalorder %s219, %s222
    %p228 = scmp.eq.s32.totalorder %s15, 0
    %p229 = por %p227, %p228
    %p230 = scmp.ne.s32.totalorder %s219, %s222
    %p231 = scmp.eq.s32.totalorder %s20, 1
    %p232 = por %p230, %p231
    %p233 = scmp.ne.s32.totalorder %s222, %s223
    %p234 = scmp.eq.s32.totalorder %s20, 0
    %p235 = por %p233, %p234
    %p236 = scmp.ne.s32.totalorder %s222, %s223
    %p237 = scmp.eq.s32.totalorder %s21, 1
    %p238 = por %p236, %p237
    %p240 = scmp.ne.s32.totalorder %s223, %s239
    %p241 = scmp.eq.s32.totalorder %s21, 0
    %p242 = por %p240, %p241
    %p243 = scmp.le.s32.totalorder 1, %s15
    %p244 = scmp.lt.s32.totalorder %s15, 3
    %p245 = pnand %p243, %p244
    %p246 = pneg %p245
    // Predicated region
    $region9: #{fcc_autoencoder_fused.1} parent=5 // pred_check
      _
    $region10: #{fcc_autoencoder_fused.1} parent=5 // pred_check_branch
      %248 = sbr.rel (%p245) target = $region12
    $region11: #{fcc_autoencoder_fused.1} parent=5 // pred_region
      %s249 = ssub.s32 %s15, 1
      // Predicated region
      $region13: #{fcc_autoencoder_fused.1} parent=11 // pred_check
        %p250 = pneg %p62
      $region14: #{fcc_autoencoder_fused.1} parent=11 // pred_check_branch
        %252 = sbr.rel (%p250) target = $region16
      $region15: #{fcc_autoencoder_fused.1} parent=11 // pred_region
        _
      $region16: #{fcc_autoencoder_fused.1} parent=11 // pred_fallthru
        _
      // Predicated region
      $region17: #{fcc_autoencoder_fused.1} parent=11 // pred_check
        %p253 = pneg %p83
      $region18: #{fcc_autoencoder_fused.1} parent=11 // pred_check_branch
        %255 = sbr.rel (%p253) target = $region20
      $region19: #{fcc_autoencoder_fused.1} parent=11 // pred_region
        _
      $region20: #{fcc_autoencoder_fused.1} parent=11 // pred_fallthru
        _
      // Predicated region
      $region21: #{fcc_autoencoder_fused.1} parent=11 // pred_check
        %p256 = pneg %p104
      $region22: #{fcc_autoencoder_fused.1} parent=11 // pred_check_branch
        %258 = sbr.rel (%p256) target = $region24
      $region23: #{fcc_autoencoder_fused.1} parent=11 // pred_region
        _
      $region24: #{fcc_autoencoder_fused.1} parent=11 // pred_fallthru
        _
      // Predicated region
      $region25: #{fcc_autoencoder_fused.1} parent=11 // pred_check
        %p259 = pneg %p125
      $region26: #{fcc_autoencoder_fused.1} parent=11 // pred_check_branch
        %261 = sbr.rel (%p259) target = $region28
      $region27: #{fcc_autoencoder_fused.1} parent=11 // pred_region
        _
      $region28: #{fcc_autoencoder_fused.1} parent=11 // pred_fallthru
        _
      // Predicated region
      $region29: #{fcc_autoencoder_fused.1} parent=11 // pred_check
        %p262 = pneg %p146
      $region30: #{fcc_autoencoder_fused.1} parent=11 // pred_check_branch
        %264 = sbr.rel (%p262) target = $region32
      $region31: #{fcc_autoencoder_fused.1} parent=11 // pred_region
        _
      $region32: #{fcc_autoencoder_fused.1} parent=11 // pred_fallthru
        _
      // Predicated region
      $region33: #{fcc_autoencoder_fused.1} parent=11 // pred_check
        %p265 = pneg %p167
      $region34: #{fcc_autoencoder_fused.1} parent=11 // pred_check_branch
        %267 = sbr.rel (%p265) target = $region36
      $region35: #{fcc_autoencoder_fused.1} parent=11 // pred_region
        _
      $region36: #{fcc_autoencoder_fused.1} parent=11 // pred_fallthru
        _
      // Predicated region
      $region37: #{fcc_autoencoder_fused.1} parent=11 // pred_check
        %p268 = pneg %p188
      $region38: #{fcc_autoencoder_fused.1} parent=11 // pred_check_branch
        %270 = sbr.rel (%p268) target = $region40
      $region39: #{fcc_autoencoder_fused.1} parent=11 // pred_region
        _
      $region40: #{fcc_autoencoder_fused.1} parent=11 // pred_fallthru
        _
      // Predicated region
      $region41: #{fcc_autoencoder_fused.1} parent=11 // pred_check
        %p271 = pneg %p209
      $region42: #{fcc_autoencoder_fused.1} parent=11 // pred_check_branch
        %273 = sbr.rel (%p271) target = $region44
      $region43: #{fcc_autoencoder_fused.1} parent=11 // pred_region
        _
      $region44: #{fcc_autoencoder_fused.1} parent=11 // pred_fallthru
        _
    $region12: #{fcc_autoencoder_fused.1} parent=5 // pred_fallthru
      _
    %p274 = scmp.lt.s32.totalorder %s15, 2
    // Predicated region
    $region45: #{fcc_autoencoder_fused.1} parent=5 // pred_check
      %p275 = pneg %p274
    $region46: #{fcc_autoencoder_fused.1} parent=5 // pred_check_branch
      %277 = sbr.rel (%p275) target = $region48
    $region47: #{fcc_autoencoder_fused.1} parent=5 // pred_region
      // Predicated region
      $region49: #{fcc_autoencoder_fused.1} parent=47 // pred_check
        %p278 = pneg %p35
      $region50: #{fcc_autoencoder_fused.1} parent=47 // pred_check_branch
        %280 = sbr.rel (%p278) target = $region52
      $region51: #{fcc_autoencoder_fused.1} parent=47 // pred_region
        %p281 = scmp.lt.s32.totalorder %s15, 1
        %s282 = scalar_select %p281, %s15, 1
        %s283 = smul.addr %s282, 8
        %s284 = scalar_lea.vmem %s0, %s283
      $region52: #{fcc_autoencoder_fused.1} parent=47 // pred_fallthru
        _
    $region48: #{fcc_autoencoder_fused.1} parent=5 // pred_fallthru
      _
    %p285 = scmp.le.s32.totalorder 1, %s15
    %p286 = scmp.lt.s32.totalorder %s15, 3
    %p287 = pnand %p285, %p286
    %p288 = pneg %p287
    // Predicated region
    $region53: #{fcc_autoencoder_fused.1} parent=5 // pred_check
      _
    $region54: #{fcc_autoencoder_fused.1} parent=5 // pred_check_branch
      %290 = sbr.rel (%p287) target = $region56
    $region55: #{fcc_autoencoder_fused.1} parent=5 // pred_region
      %s291 = ssub.s32 %s15, 1
      %p292 = scmp.lt.s32.totalorder %s20, 1
      %s293 = scalar_select %p292, %s20, 1
      %s294 = smul.addr %s293, 8
      %s295 = scalar_lea.vmem %s0, %s294
      %p296 = pneg %p41
      %p297 = pneg %p38
      %p298 = pneg %p62
      %p299 = pneg %p59
      %p300 = pneg %p83
      %p301 = pneg %p80
      %p302 = pneg %p104
      %p303 = pneg %p101
      %p304 = pneg %p125
      %p305 = pneg %p122
      %p306 = pneg %p146
      %p307 = pneg %p143
      %p308 = pneg %p167
      %p309 = pneg %p164
      %p310 = pneg %p188
      %p311 = pneg %p185
      %p312 = pneg %p209
      %p313 = pneg %p206
      %p314 = pneg %p235
      %p315 = pneg %p232
      %p316 = scmp.lt.s32.totalorder %s20, 1
      %s317 = scalar_select %p316, %s20, 1
      %s318 = smul.addr %s317, 8
      %s319 = scalar_lea.vmem %s9, %s318
      %p320 = scmp.lt.s32.totalorder %s20, 1
      %s321 = scalar_select %p320, %s20, 1
      %s322 = smul.addr %s321, 8
      %s323 = scalar_lea.vmem %s0, %s322
      %p324 = scmp.lt.s32.totalorder %s20, 1
      %s325 = scalar_select %p324, %s20, 1
      %s326 = smul.addr %s325, 8
      %s327 = scalar_lea.vmem %s9, %s326
      %v328 = vld [vmem:[%s323] sm:$0xff]
      %v329 = vld [vmem:[%s1] sm:$0xff]
      %v330 = vld [vmem:[%s1 + $0x8] sm:$0xff]
      %v331 = vld [vmem:[%s1 + $0x10] sm:$0xff]
      %v332 = vld [vmem:[%s1 + $0x18] sm:$0xff]
      %v333 = vld [vmem:[%s1 + $0x20] sm:$0xff]
      %v334 = vld [vmem:[%s1 + $0x28] sm:$0xff]
      %v335 = vld [vmem:[%s1 + $0x30] sm:$0xff]
      %v336 = vld [vmem:[%s1 + $0x38] sm:$0xff]
      %v337 = vld [vmem:[%s1 + $0x40] sm:$0xff]
      %v338 = vld [vmem:[%s1 + $0x48] sm:$0xff]
      %v339 = vld [vmem:[%s1 + $0x50] sm:$0xff]
      %v340 = vld [vmem:[%s1 + $0x58] sm:$0xff]
      %v341 = vld [vmem:[%s1 + $0x60] sm:$0xff]
      %v342 = vld [vmem:[%s1 + $0x68] sm:$0xff]
      %v343 = vld [vmem:[%s1 + $0x70] sm:$0xff]
      %v344 = vld [vmem:[%s1 + $0x78] sm:$0xff]
      %v345 = vld [vmem:[%s2] sm:$0x1]
      %v347 = vlaneseq
      %v348 = vshrl.u32 %v347, 7
      %v349 = vsub.s32 0, %v348
      %v350 = vrot.slane %v345, %v349
      %352 = vmatprep.subr.mxu0 0.0
      %353 = vmatpush1.msra.mxu0 %v344
      %354 = vmatprep.subr.mxu0 0.0
      %355 = vmatpush1.msra.mxu0 %v343
      %356 = vmatprep.subr.mxu0 0.0
      %357 = vmatpush1.msra.mxu0 %v342
      %358 = vmatprep.subr.mxu0 0.0
      %359 = vmatpush1.msra.mxu0 %v341
      %360 = vmatprep.subr.mxu0 0.0
      %361 = vmatpush1.msra.mxu0 %v340
      %362 = vmatprep.subr.mxu0 0.0
      %363 = vmatpush1.msra.mxu0 %v339
      %364 = vmatprep.subr.mxu0 0.0
      %365 = vmatpush1.msra.mxu0 %v338
      %366 = vmatprep.subr.mxu0 0.0
      %367 = vmatpush1.msra.mxu0 %v337
      %368 = vmatprep.subr.mxu0 0.0
      %369 = vmatpush1.msra.mxu0 %v336
      %370 = vmatprep.subr.mxu0 0.0
      %371 = vmatpush1.msra.mxu0 %v335
      %372 = vmatprep.subr.mxu0 0.0
      %373 = vmatpush1.msra.mxu0 %v334
      %374 = vmatprep.subr.mxu0 0.0
      %375 = vmatpush1.msra.mxu0 %v333
      %376 = vmatprep.subr.mxu0 0.0
      %377 = vmatpush1.msra.mxu0 %v332
      %378 = vmatprep.subr.mxu0 0.0
      %379 = vmatpush1.msra.mxu0 %v331
      %380 = vmatprep.subr.mxu0 0.0
      %381 = vmatpush1.msra.mxu0 %v330
      %382 = vmatprep.subr.mxu0 0.0
      %383 = vmatpush1.msra.mxu0 %v329
      %384 = vmatprep.subr.mxu0 0.0
      %385 = vmatpush2.msra.mxu0 0.0
      %386 = vmatprep.subr.mxu0 0.0
      %387 = vmatpush2.msra.mxu0 0.0
      %388 = vmatprep.subr.mxu0 0.0
      %389 = vmatpush2.msra.mxu0 0.0
      %390 = vmatprep.subr.mxu0 0.0
      %391 = vmatpush2.msra.mxu0 0.0
      %392 = vmatprep.subr.mxu0 0.0
      %393 = vmatpush2.msra.mxu0 0.0
      %394 = vmatprep.subr.mxu0 0.0
      %395 = vmatpush2.msra.mxu0 0.0
      %396 = vmatprep.subr.mxu0 0.0
      %397 = vmatpush2.msra.mxu0 0.0
      %398 = vmatprep.subr.mxu0 0.0
      %399 = vmatpush2.msra.mxu0 0.0
      %400 = vmatprep.subr.mxu0 0.0
      %401 = vmatpush2.msra.mxu0 0.0
      %402 = vmatprep.subr.mxu0 0.0
      %403 = vmatpush2.msra.mxu0 0.0
      %404 = vmatprep.subr.mxu0 0.0
      %405 = vmatpush2.msra.mxu0 0.0
      %406 = vmatprep.subr.mxu0 0.0
      %407 = vmatpush2.msra.mxu0 0.0
      %408 = vmatprep.subr.mxu0 0.0
      %409 = vmatpush2.msra.mxu0 0.0
      %410 = vmatprep.subr.mxu0 0.0
      %411 = vmatpush2.msra.mxu0 0.0
      %412 = vmatprep.subr.mxu0 0.0
      %413 = vmatpush2.msra.mxu0 0.0
      %414 = vmatprep.subr.mxu0 0.0
      %415 = vmatpush2.msra.mxu0 0.0
      %416 = vmatprep.mubr.f32.mxu0 0.0
      %417 = vmatmul.mubr.f32.gmra.mxu0 %v328
      %v418 = vpop.f32.mrf.mxu0
      %v419 = vadd.f32 %v350, %v418
      %v420 = vpop.f32.mrf.mxu0
      %421 = vdwg.mxu0
      %v422 = vmax.f32 %v419, 0.0
      %v423 = vld [vmem:[%s3] sm:$0xff]
      %v424 = vld [vmem:[%s3 + $0x8] sm:$0xff]
      %v425 = vld [vmem:[%s3 + $0x10] sm:$0xff]
      %v426 = vld [vmem:[%s3 + $0x18] sm:$0xff]
      %v427 = vld [vmem:[%s3 + $0x20] sm:$0xff]
      %v428 = vld [vmem:[%s3 + $0x28] sm:$0xff]
      %v429 = vld [vmem:[%s3 + $0x30] sm:$0xff]
      %v430 = vld [vmem:[%s3 + $0x38] sm:$0xff]
      %v431 = vld [vmem:[%s3 + $0x40] sm:$0xff]
      %v432 = vld [vmem:[%s3 + $0x48] sm:$0xff]
      %v433 = vld [vmem:[%s3 + $0x50] sm:$0xff]
      %v434 = vld [vmem:[%s3 + $0x58] sm:$0xff]
      %v435 = vld [vmem:[%s3 + $0x60] sm:$0xff]
      %v436 = vld [vmem:[%s3 + $0x68] sm:$0xff]
      %v437 = vld [vmem:[%s3 + $0x70] sm:$0xff]
      %v438 = vld [vmem:[%s3 + $0x78] sm:$0xff]
      %v439 = vld [vmem:[%s4] sm:$0x1]
      %v441 = vlaneseq
      %v442 = vshrl.u32 %v441, 7
      %v443 = vsub.s32 0, %v442
      %v444 = vrot.slane %v439, %v443
      %446 = vmatprep.subr.mxu0 0.0
      %447 = vmatpush1.msra.mxu0 %v438
      %448 = vmatprep.subr.mxu0 0.0
      %449 = vmatpush1.msra.mxu0 %v437
      %450 = vmatprep.subr.mxu0 0.0
      %451 = vmatpush1.msra.mxu0 %v436
      %452 = vmatprep.subr.mxu0 0.0
      %453 = vmatpush1.msra.mxu0 %v435
      %454 = vmatprep.subr.mxu0 0.0
      %455 = vmatpush1.msra.mxu0 %v434
      %456 = vmatprep.subr.mxu0 0.0
      %457 = vmatpush1.msra.mxu0 %v433
      %458 = vmatprep.subr.mxu0 0.0
      %459 = vmatpush1.msra.mxu0 %v432
      %460 = vmatprep.subr.mxu0 0.0
      %461 = vmatpush1.msra.mxu0 %v431
      %462 = vmatprep.subr.mxu0 0.0
      %463 = vmatpush1.msra.mxu0 %v430
      %464 = vmatprep.subr.mxu0 0.0
      %465 = vmatpush1.msra.mxu0 %v429
      %466 = vmatprep.subr.mxu0 0.0
      %467 = vmatpush1.msra.mxu0 %v428
      %468 = vmatprep.subr.mxu0 0.0
      %469 = vmatpush1.msra.mxu0 %v427
      %470 = vmatprep.subr.mxu0 0.0
      %471 = vmatpush1.msra.mxu0 %v426
      %472 = vmatprep.subr.mxu0 0.0
      %473 = vmatpush1.msra.mxu0 %v425
      %474 = vmatprep.subr.mxu0 0.0
      %475 = vmatpush1.msra.mxu0 %v424
      %476 = vmatprep.subr.mxu0 0.0
      %477 = vmatpush1.msra.mxu0 %v423
      %478 = vmatprep.subr.mxu0 0.0
      %479 = vmatpush2.msra.mxu0 0.0
      %480 = vmatprep.subr.mxu0 0.0
      %481 = vmatpush2.msra.mxu0 0.0
      %482 = vmatprep.subr.mxu0 0.0
      %483 = vmatpush2.msra.mxu0 0.0
      %484 = vmatprep.subr.mxu0 0.0
      %485 = vmatpush2.msra.mxu0 0.0
      %486 = vmatprep.subr.mxu0 0.0
      %487 = vmatpush2.msra.mxu0 0.0
      %488 = vmatprep.subr.mxu0 0.0
      %489 = vmatpush2.msra.mxu0 0.0
      %490 = vmatprep.subr.mxu0 0.0
      %491 = vmatpush2.msra.mxu0 0.0
      %492 = vmatprep.subr.mxu0 0.0
      %493 = vmatpush2.msra.mxu0 0.0
      %494 = vmatprep.subr.mxu0 0.0
      %495 = vmatpush2.msra.mxu0 0.0
      %496 = vmatprep.subr.mxu0 0.0
      %497 = vmatpush2.msra.mxu0 0.0
      %498 = vmatprep.subr.mxu0 0.0
      %499 = vmatpush2.msra.mxu0 0.0
      %500 = vmatprep.subr.mxu0 0.0
      %501 = vmatpush2.msra.mxu0 0.0
      %502 = vmatprep.subr.mxu0 0.0
      %503 = vmatpush2.msra.mxu0 0.0
      %504 = vmatprep.subr.mxu0 0.0
      %505 = vmatpush2.msra.mxu0 0.0
      %506 = vmatprep.subr.mxu0 0.0
      %507 = vmatpush2.msra.mxu0 0.0
      %508 = vmatprep.subr.mxu0 0.0
      %509 = vmatpush2.msra.mxu0 0.0
      %510 = vmatprep.mubr.f32.mxu0 0.0
      %511 = vmatmul.mubr.f32.gmra.mxu0 %v422
      %v512 = vpop.f32.mrf.mxu0
      %v513 = vadd.f32 %v444, %v512
      %v514 = vpop.f32.mrf.mxu0
      %515 = vdwg.mxu0
      %v516 = vmax.f32 %v513, 0.0
      %v517 = vld [vmem:[%s5] sm:$0xff]
      %v518 = vld [vmem:[%s5 + $0x8] sm:$0xff]
      %v519 = vld [vmem:[%s5 + $0x10] sm:$0xff]
      %v520 = vld [vmem:[%s5 + $0x18] sm:$0xff]
      %v521 = vld [vmem:[%s5 + $0x20] sm:$0xff]
      %v522 = vld [vmem:[%s5 + $0x28] sm:$0xff]
      %v523 = vld [vmem:[%s5 + $0x30] sm:$0xff]
      %v524 = vld [vmem:[%s5 + $0x38] sm:$0xff]
      %v525 = vld [vmem:[%s5 + $0x40] sm:$0xff]
      %v526 = vld [vmem:[%s5 + $0x48] sm:$0xff]
      %v527 = vld [vmem:[%s5 + $0x50] sm:$0xff]
      %v528 = vld [vmem:[%s5 + $0x58] sm:$0xff]
      %v529 = vld [vmem:[%s5 + $0x60] sm:$0xff]
      %v530 = vld [vmem:[%s5 + $0x68] sm:$0xff]
      %v531 = vld [vmem:[%s5 + $0x70] sm:$0xff]
      %v532 = vld [vmem:[%s5 + $0x78] sm:$0xff]
      %v533 = vld [vmem:[%s6] sm:$0x1]
      %v535 = vlaneseq
      %v536 = vshrl.u32 %v535, 7
      %v537 = vsub.s32 0, %v536
      %v538 = vrot.slane %v533, %v537
      %540 = vmatprep.subr.mxu0 0.0
      %541 = vmatpush1.msra.mxu0 %v532
      %542 = vmatprep.subr.mxu0 0.0
      %543 = vmatpush1.msra.mxu0 %v531
      %544 = vmatprep.subr.mxu0 0.0
      %545 = vmatpush1.msra.mxu0 %v530
      %546 = vmatprep.subr.mxu0 0.0
      %547 = vmatpush1.msra.mxu0 %v529
      %548 = vmatprep.subr.mxu0 0.0
      %549 = vmatpush1.msra.mxu0 %v528
      %550 = vmatprep.subr.mxu0 0.0
      %551 = vmatpush1.msra.mxu0 %v527
      %552 = vmatprep.subr.mxu0 0.0
      %553 = vmatpush1.msra.mxu0 %v526
      %554 = vmatprep.subr.mxu0 0.0
      %555 = vmatpush1.msra.mxu0 %v525
      %556 = vmatprep.subr.mxu0 0.0
      %557 = vmatpush1.msra.mxu0 %v524
      %558 = vmatprep.subr.mxu0 0.0
      %559 = vmatpush1.msra.mxu0 %v523
      %560 = vmatprep.subr.mxu0 0.0
      %561 = vmatpush1.msra.mxu0 %v522
      %562 = vmatprep.subr.mxu0 0.0
      %563 = vmatpush1.msra.mxu0 %v521
      %564 = vmatprep.subr.mxu0 0.0
      %565 = vmatpush1.msra.mxu0 %v520
      %566 = vmatprep.subr.mxu0 0.0
      %567 = vmatpush1.msra.mxu0 %v519
      %568 = vmatprep.subr.mxu0 0.0
      %569 = vmatpush1.msra.mxu0 %v518
      %570 = vmatprep.subr.mxu0 0.0
      %571 = vmatpush1.msra.mxu0 %v517
      %572 = vmatprep.subr.mxu0 0.0
      %573 = vmatpush2.msra.mxu0 0.0
      %574 = vmatprep.subr.mxu0 0.0
      %575 = vmatpush2.msra.mxu0 0.0
      %576 = vmatprep.subr.mxu0 0.0
      %577 = vmatpush2.msra.mxu0 0.0
      %578 = vmatprep.subr.mxu0 0.0
      %579 = vmatpush2.msra.mxu0 0.0
      %580 = vmatprep.subr.mxu0 0.0
      %581 = vmatpush2.msra.mxu0 0.0
      %582 = vmatprep.subr.mxu0 0.0
      %583 = vmatpush2.msra.mxu0 0.0
      %584 = vmatprep.subr.mxu0 0.0
      %585 = vmatpush2.msra.mxu0 0.0
      %586 = vmatprep.subr.mxu0 0.0
      %587 = vmatpush2.msra.mxu0 0.0
      %588 = vmatprep.subr.mxu0 0.0
      %589 = vmatpush2.msra.mxu0 0.0
      %590 = vmatprep.subr.mxu0 0.0
      %591 = vmatpush2.msra.mxu0 0.0
      %592 = vmatprep.subr.mxu0 0.0
      %593 = vmatpush2.msra.mxu0 0.0
      %594 = vmatprep.subr.mxu0 0.0
      %595 = vmatpush2.msra.mxu0 0.0
      %596 = vmatprep.subr.mxu0 0.0
      %597 = vmatpush2.msra.mxu0 0.0
      %598 = vmatprep.subr.mxu0 0.0
      %599 = vmatpush2.msra.mxu0 0.0
      %600 = vmatprep.subr.mxu0 0.0
      %601 = vmatpush2.msra.mxu0 0.0
      %602 = vmatprep.subr.mxu0 0.0
      %603 = vmatpush2.msra.mxu0 0.0
      %604 = vmatprep.mubr.f32.mxu0 0.0
      %605 = vmatmul.mubr.f32.gmra.mxu0 %v516
      %v606 = vpop.f32.mrf.mxu0
      %v607 = vadd.f32 %v538, %v606
      %v608 = vpop.f32.mrf.mxu0
      %609 = vdwg.mxu0
      %v610 = vmax.f32 %v607, 0.0
      %v611 = vld [vmem:[%s7] sm:$0xff]
      %v612 = vld [vmem:[%s7 + $0x8] sm:$0xff]
      %v613 = vld [vmem:[%s7 + $0x10] sm:$0xff]
      %v614 = vld [vmem:[%s7 + $0x18] sm:$0xff]
      %v615 = vld [vmem:[%s7 + $0x20] sm:$0xff]
      %v616 = vld [vmem:[%s7 + $0x28] sm:$0xff]
      %v617 = vld [vmem:[%s7 + $0x30] sm:$0xff]
      %v618 = vld [vmem:[%s7 + $0x38] sm:$0xff]
      %v619 = vld [vmem:[%s7 + $0x40] sm:$0xff]
      %v620 = vld [vmem:[%s7 + $0x48] sm:$0xff]
      %v621 = vld [vmem:[%s7 + $0x50] sm:$0xff]
      %v622 = vld [vmem:[%s7 + $0x58] sm:$0xff]
      %v623 = vld [vmem:[%s7 + $0x60] sm:$0xff]
      %v624 = vld [vmem:[%s7 + $0x68] sm:$0xff]
      %v625 = vld [vmem:[%s7 + $0x70] sm:$0xff]
      %v626 = vld [vmem:[%s7 + $0x78] sm:$0xff]
      %v627 = vld [vmem:[%s8] sm:$0x1]
      %v629 = vlaneseq
      %v630 = vshrl.u32 %v629, 7
      %v631 = vsub.s32 0, %v630
      %v632 = vrot.slane %v627, %v631
      %634 = vmatprep.subr.mxu0 0.0
      %635 = vmatpush1.msra.mxu0 %v626
      %636 = vmatprep.subr.mxu0 0.0
      %637 = vmatpush1.msra.mxu0 %v625
      %638 = vmatprep.subr.mxu0 0.0
      %639 = vmatpush1.msra.mxu0 %v624
      %640 = vmatprep.subr.mxu0 0.0
      %641 = vmatpush1.msra.mxu0 %v623
      %642 = vmatprep.subr.mxu0 0.0
      %643 = vmatpush1.msra.mxu0 %v622
      %644 = vmatprep.subr.mxu0 0.0
      %645 = vmatpush1.msra.mxu0 %v621
      %646 = vmatprep.subr.mxu0 0.0
      %647 = vmatpush1.msra.mxu0 %v620
      %648 = vmatprep.subr.mxu0 0.0
      %649 = vmatpush1.msra.mxu0 %v619
      %650 = vmatprep.subr.mxu0 0.0
      %651 = vmatpush1.msra.mxu0 %v618
      %652 = vmatprep.subr.mxu0 0.0
      %653 = vmatpush1.msra.mxu0 %v617
      %654 = vmatprep.subr.mxu0 0.0
      %655 = vmatpush1.msra.mxu0 %v616
      %656 = vmatprep.subr.mxu0 0.0
      %657 = vmatpush1.msra.mxu0 %v615
      %658 = vmatprep.subr.mxu0 0.0
      %659 = vmatpush1.msra.mxu0 %v614
      %660 = vmatprep.subr.mxu0 0.0
      %661 = vmatpush1.msra.mxu0 %v613
      %662 = vmatprep.subr.mxu0 0.0
      %663 = vmatpush1.msra.mxu0 %v612
      %664 = vmatprep.subr.mxu0 0.0
      %665 = vmatpush1.msra.mxu0 %v611
      %666 = vmatprep.subr.mxu0 0.0
      %667 = vmatpush2.msra.mxu0 0.0
      %668 = vmatprep.subr.mxu0 0.0
      %669 = vmatpush2.msra.mxu0 0.0
      %670 = vmatprep.subr.mxu0 0.0
      %671 = vmatpush2.msra.mxu0 0.0
      %672 = vmatprep.subr.mxu0 0.0
      %673 = vmatpush2.msra.mxu0 0.0
      %674 = vmatprep.subr.mxu0 0.0
      %675 = vmatpush2.msra.mxu0 0.0
      %676 = vmatprep.subr.mxu0 0.0
      %677 = vmatpush2.msra.mxu0 0.0
      %678 = vmatprep.subr.mxu0 0.0
      %679 = vmatpush2.msra.mxu0 0.0
      %680 = vmatprep.subr.mxu0 0.0
      %681 = vmatpush2.msra.mxu0 0.0
      %682 = vmatprep.subr.mxu0 0.0
      %683 = vmatpush2.msra.mxu0 0.0
      %684 = vmatprep.subr.mxu0 0.0
      %685 = vmatpush2.msra.mxu0 0.0
      %686 = vmatprep.subr.mxu0 0.0
      %687 = vmatpush2.msra.mxu0 0.0
      %688 = vmatprep.subr.mxu0 0.0
      %689 = vmatpush2.msra.mxu0 0.0
      %690 = vmatprep.subr.mxu0 0.0
      %691 = vmatpush2.msra.mxu0 0.0
      %692 = vmatprep.subr.mxu0 0.0
      %693 = vmatpush2.msra.mxu0 0.0
      %694 = vmatprep.subr.mxu0 0.0
      %695 = vmatpush2.msra.mxu0 0.0
      %696 = vmatprep.subr.mxu0 0.0
      %697 = vmatpush2.msra.mxu0 0.0
      %698 = vmatprep.mubr.f32.mxu0 0.0
      %699 = vmatmul.mubr.f32.gmra.mxu0 %v610
      %v700 = vpop.f32.mrf.mxu0
      %v701 = vadd.f32 %v632, %v700
      %v702 = vpop.f32.mrf.mxu0
      %703 = vdwg.mxu0
      %v704 = vmax.f32 %v701, 0.0
      %705 = vst [vmem:[%s327] sm:$0xff] %v704
      %p706 = scmp.lt.s32.totalorder %s20, 1
      %s707 = scalar_select %p706, %s20, 1
      %s708 = smul.addr %s707, 8
      %s709 = scalar_lea.vmem %s9, %s708
      // Predicated region
      $region57: #{fcc_autoencoder_fused.1} parent=55 // pred_check
        %p710 = pneg %p232
      $region58: #{fcc_autoencoder_fused.1} parent=55 // pred_check_branch
        %712 = sbr.rel (%p710) target = $region60
      $region59: #{fcc_autoencoder_fused.1} parent=55 // pred_region
        _
      $region60: #{fcc_autoencoder_fused.1} parent=55 // pred_fallthru
        _
    $region56: #{fcc_autoencoder_fused.1} parent=5 // pred_fallthru
      _
    %p713 = scmp.le.s32.totalorder 2, %s15
    // Predicated region
    $region61: #{fcc_autoencoder_fused.1} parent=5 // pred_check
      %p714 = pneg %p713
    $region62: #{fcc_autoencoder_fused.1} parent=5 // pred_check_branch
      %716 = sbr.rel (%p714) target = $region64
    $region63: #{fcc_autoencoder_fused.1} parent=5 // pred_region
      %s717 = ssub.s32 %s15, 2
      // Predicated region
      $region65: #{fcc_autoencoder_fused.1} parent=63 // pred_check
        %p718 = pneg %p238
      $region66: #{fcc_autoencoder_fused.1} parent=63 // pred_check_branch
        %720 = sbr.rel (%p718) target = $region68
      $region67: #{fcc_autoencoder_fused.1} parent=63 // pred_region
        %p721 = scmp.lt.s32.totalorder %s21, 1
        %s722 = scalar_select %p721, %s21, 1
        %s723 = smul.addr %s722, 8
        %s724 = scalar_lea.vmem %s9, %s723
      $region68: #{fcc_autoencoder_fused.1} parent=63 // pred_fallthru
        _
    $region64: #{fcc_autoencoder_fused.1} parent=5 // pred_fallthru
      _
  $region6: #{fcc_autoencoder_fused.1} parent=0 // loop_footer
    %s19 = sadd.s32 1, %s15
  $region7: #{fcc_autoencoder_fused.1} parent=0 // loop_footer_branch
    %14 = sbr.rel target = $region3
  $region8: #{fcc_autoencoder_fused.1} parent=0 // loop_exit
    _

</llo_original>
